<compile_context>
chip_gen: v6e
topology: v6e:2x2x1
jax: 0.10.0
libtpu: 0.0.40
codegen_flags: <defaults>
</compile_context>

<pallas_src>
import jax
import jax.numpy as jnp
import numpy as np
from jax.experimental import pallas as pl
from jax.experimental.pallas import tpu as pltpu


# Conv-matmul operand precision.  Kept at float32 for numerical parity with the PyTorch
# float32 reference (accumulation is always f32 via preferred_element_type).  On v6e/v7x
# flip to jnp.bfloat16 for the full-rate bf16 MXU path (taps are then built/stored in
# bf16 too); on v5e keep elementwise math in f32 (its VPU/EUP have no bf16) and only the
# dot operands go bf16.  Re-validate tolerances when flipping.
MATMUL_DTYPE = jnp.float32


def _round_up(v, m):
    return (v + m - 1) // m * m


def _vmem_limit_bytes():
    # ~3/4 of physical VMEM: ~96 MiB on v5e/v6e (128 MiB), ~48 MiB on v7x (64 MiB).
    try:
        info = pltpu.get_tpu_info()
        cap = int(getattr(info, "vmem_capacity_bytes", 128 * 1024 * 1024))
    except Exception:
        cap = 128 * 1024 * 1024
    return min(int(cap * 3 // 4), 100 * 1024 * 1024)


def _pick_samples_per_block(N, HW, target_lanes=1024, max_b=8):
    # Concatenate B samples along the lane axis so each grid step feeds the MXU with
    # >= ~8 vregs of lanes; B must divide N.
    # TODO(synk): on v7x (2 TensorCores) prefer keeping the parallel grid length >= 2
    # (or add a parallel spatial-tile axis with a two-pass InstanceNorm) so both cores
    # stay busy at realistic H*W.
    best = 1
    for b in range(1, min(N, max_b) + 1):
        if N % b == 0:
            best = b
            if b * HW >= target_lanes:
                break
    return best


# ---------------------------------------------------------------------------
# Static tap geometry (trace-time numpy): flat-index offsets + zero-padding masks
# ---------------------------------------------------------------------------
def _tap_geometry(H, W, k, pad):
    yy, xx = np.meshgrid(np.arange(H), np.arange(W), indexing="ij")
    offsets, masks = [], []
    for ky in range(k):
        for kx in range(k):
            dy, dx = ky - pad, kx - pad
            offsets.append(dy * W + dx)
            valid = (yy + dy >= 0) & (yy + dy < H) & (xx + dx >= 0) & (xx + dx < W)
            masks.append(valid.reshape(-1).astype(np.float32))
    return offsets, np.stack(masks, axis=0)  # (k*k, H*W) numpy


# ---------------------------------------------------------------------------
# One-time parameter repacking (NOT in the forward path)
# ---------------------------------------------------------------------------
def prepare_unit_params(params, Cin, Cout, k=3):
    """Repack the hyper-network Linear parameters so a single `hyper_W @ h + hyper_b`
    matvec emits the conv weights directly in the kernel's padded (rows, T*C_p) layout,
    with the 1x1 residual conv folded into the conv-1 weight (center-tap columns).
    The conv biases b1/b2 are dropped (exact no-ops before affine-free InstanceNorm)."""
    T = k * k
    pad = (k - 1) // 2
    center = pad * k + pad
    Cin_p, Cout_p = _round_up(Cin, 8), _round_up(Cout, 8)

    def gather_rows(W, b, src_idx):
        src_idx = np.asarray(src_idx, np.int32)
        valid = jnp.asarray(src_idx >= 0)
        safe = jnp.asarray(np.where(src_idx >= 0, src_idx, 0).astype(np.int32))
        Wp = jnp.where(valid[:, None], jnp.asarray(W)[safe, :], 0.0)
        bp = jnp.where(valid, jnp.asarray(b)[safe], 0.0)
        return Wp, bp

    o = np.arange(Cout_p)[:, None, None]
    t = np.arange(T)[None, :, None]
    c1 = np.arange(Cin_p)[None, None, :]
    c2 = np.arange(Cout_p)[None, None, :]

    # conv-1 3x3: packed row (o, t, c) <- PyTorch OIHW flat index o*Cin*T + c*T + t
    idx_w1 = np.where((o < Cout) & (c1 < Cin), o * (Cin * T) + c1 * T + t, -1).reshape(-1)
    # residual 1x1: only the center-tap columns are populated
    idx_wr = np.where((o < Cout) & (c1 < Cin) & (t == center), o * Cin + c1, -1).reshape(-1)
    # conv-2 3x3 (Cout -> Cout)
    idx_w2 = np.where((o < Cout) & (c2 < Cout), o * (Cout * T) + c2 * T + t, -1).reshape(-1)
    # residual conv bias
    idx_br = np.where(np.arange(Cout_p) < Cout, np.arange(Cout_p), -1)

    W1p, b1p = gather_rows(params["Ww1"], params["bw1"], idx_w1)
    Wrp, brp = gather_rows(params["Wwr"], params["bwr"], idx_wr)
    W2p, b2p = gather_rows(params["Ww2"], params["bw2"], idx_w2)
    Wbp, bbp = gather_rows(params["Wbr"], params["bbr"], idx_br)

    return {
        "hyper_W": jnp.concatenate([W1p, Wrp, W2p, Wbp], axis=0),   # (L_total, F)
        "hyper_b": jnp.concatenate([b1p, brp, b2p, bbp], axis=0),   # (L_total,)
        "prelu": jnp.stack([params["prelu_a1"], params["prelu_a2"]]).astype(jnp.float32),
        "Cin": Cin, "Cout": Cout, "k": k, "Cin_p": Cin_p, "Cout_p": Cout_p,
    }


# ---------------------------------------------------------------------------
# Fused HyperResidualUnit kernel (B samples per grid step; everything stays in VMEM)
# ---------------------------------------------------------------------------
def _make_unit_kernel(tap_offsets, LW, HW, Cin_p, Cout_p, T, matmul_dtype):
    inv_hw = 1.0 / float(HW)

    def kernel(a_ref, x_ref, m_ref, seg_ref, segT_ref, w1r_ref, w2_ref, br_ref,
               o_ref, tap_ref):
        masks = m_ref[...]          # (T,  LW)   1.0 inside the image, 0.0 in zero padding
        seg = seg_ref[...]          # (LW, Bp)   per-sample lane-segment selector
        segT = segT_ref[...]        # (Bp, LW)   per-sample broadcaster

        def build_taps(src, c_p):
            # src: (c_p, LW) -> VMEM scratch rows [0, T*c_p): row t*c_p + c holds channel
            # c shifted by tap t.  pltpu.roll is a cheap XLU lane rotation; wrap-around
            # (incl. sample-seam crossings with B samples in the lane axis) is killed by
            # the zero-padding mask.  One scratch buffer is reused by both subunits.
            src = src.astype(matmul_dtype)
            for t, s in enumerate(tap_offsets):
                shifted = src if s == 0 else pltpu.roll(src, shift=(-s) % LW, axis=1)
                tap_ref[pl.ds(t * c_p, c_p), :] = (
                    shifted * masks[t:t + 1, :].astype(matmul_dtype))
            return tap_ref[pl.ds(0, T * c_p), :]

        def inst_norm_prelu(y, slope):
            # InstanceNorm2d(affine=False, eps=1e-5): per (sample, channel) over spatial.
            # Reductions and broadcasts are per-sample segment matmuls on the MXU
            # (centered two-pass form), leaving the 2 XLU units free for the tap rolls.
            mean = jnp.dot(y, seg, preferred_element_type=jnp.float32) * inv_hw     # (C,Bp)
            mean_f = jnp.dot(mean, segT, preferred_element_type=jnp.float32)        # (C,LW)
            cen = y - mean_f
            var = jnp.dot(cen * cen, seg, preferred_element_type=jnp.float32) * inv_hw
            inv_f = jnp.dot(jax.lax.rsqrt(var + 1e-5), segT,
                            preferred_element_type=jnp.float32)
            yn = cen * inv_f
            return jnp.where(yn >= 0.0, yn, slope * yn)          # PReLU, shared scalar slope

        # --- subunit-1 3x3 conv and residual 1x1 conv: ONE fused MXU pass -------------
        taps1 = build_taps(x_ref[0], Cin_p)                       # (T*Cin_p, LW)
        y = jnp.dot(w1r_ref[...].astype(matmul_dtype), taps1,
                    preferred_element_type=jnp.float32)           # (2*Cout_p, LW)
        y1 = inst_norm_prelu(y[:Cout_p, :], a_ref[0])             # Norm -> PReLU (NDA)
        res = y[Cout_p:, :] + br_ref[...]                         # residual, conv_only

        # --- subunit-2 3x3 conv -> InstanceNorm -> PReLU, fused "+ res" ---------------
        taps2 = build_taps(y1, Cout_p)
        y2 = inst_norm_prelu(
            jnp.dot(w2_ref[...].astype(matmul_dtype), taps2,
                    preferred_element_type=jnp.float32), a_ref[1])

        o_ref[0] = (y2 + res).astype(o_ref.dtype)

    return kernel


# ---------------------------------------------------------------------------
# Full HyperResidualUnit forward
# ---------------------------------------------------------------------------
def hyper_residual_unit_forward(h, x_nchw, prepared, samples_per_block=None):
    Cin, Cout, k = prepared["Cin"], prepared["Cout"], prepared["k"]
    Cin_p, Cout_p = prepared["Cin_p"], prepared["Cout_p"]
    T, pad = k * k, (k - 1) // 2
    N, Cin_x, H, W = x_nchw.shape
    assert Cin_x == Cin
    HW = H * W

    B = samples_per_block or _pick_samples_per_block(N, HW)
    assert N % B == 0
    G, LW = N // B, B * HW
    Bp = _round_up(B, 8)      # padded segment count (zero columns are inert)

    # --- hyper-networks: ONE matvec emits all conv weights in kernel layout ----------
    gen = jnp.dot(prepared["hyper_W"], h.astype(jnp.float32),
                  precision=jax.lax.Precision.HIGHEST) + prepared["hyper_b"]
    L1 = 2 * Cout_p * T * Cin_p
    L2 = Cout_p * T * Cout_p
    w1r = gen[:L1].reshape(2 * Cout_p, T * Cin_p)   # rows [:Cout_p]=3x3 conv1,
    #                                                 rows [Cout_p:]=1x1 residual (center tap)
    w2 = gen[L1:L1 + L2].reshape(Cout_p, T * Cout_p)
    br = gen[L1 + L2:].reshape(Cout_p, 1)

    # --- static geometry: tap offsets, zero-pad masks (tiled across B samples),
    #     and per-sample lane-segment selectors for the in-kernel InstanceNorm ---------
    tap_offsets, masks_hw = _tap_geometry(H, W, k, pad)          # numpy, trace-time
    masks = jnp.asarray(np.tile(masks_hw, (1, B)))               # (T, LW)
    seg_np = np.zeros((LW, Bp), np.float32)
    for b in range(B):
        seg_np[b * HW:(b + 1) * HW, b] = 1.0
    seg, segT = jnp.asarray(seg_np), jnp.asarray(seg_np.T)

    # --- x: NCHW -> (G, Cin_p, B*HW): B samples concatenated along the lane axis ------
    x = jnp.pad(x_nchw.astype(jnp.float32),
                ((0, 0), (0, Cin_p - Cin), (0, 0), (0, 0)))
    x = x.reshape(G, B, Cin_p, HW).transpose(0, 2, 1, 3).reshape(G, Cin_p, LW)

    kernel = _make_unit_kernel(tap_offsets, LW, HW, Cin_p, Cout_p, T, MATMUL_DTYPE)
    Cmax_p = max(Cin_p, Cout_p)

    # NOTE: weight/mask/segment blocks are constant across grid steps; at these sizes
    # (a few KB each) the default double-buffer VMEM cost is negligible, so no
    # pipeline_mode override is applied.
    # TODO(synk): at realistic H*W on v7x (64 MiB VMEM), add a parallel spatial-tile
    # grid axis with a two-pass InstanceNorm instead of the single (T*C_p, B*HW) block.
    out = pl.pallas_call(
        kernel,
        out_shape=jax.ShapeDtypeStruct((G, Cout_p, LW), jnp.float32),
        grid_spec=pltpu.PrefetchScalarGridSpec(
            num_scalar_prefetch=0,
            grid=(G,),
            in_specs=[
                pl.BlockSpec(memory_space=pltpu.MemorySpace.SMEM),       # PReLU slopes (2,)
                pl.BlockSpec((1, Cin_p, LW), lambda g: (g, 0, 0)),       # x, B samples/step
                pl.BlockSpec((T, LW), lambda g: (0, 0)),                 # tap masks
                pl.BlockSpec((LW, Bp), lambda g: (0, 0)),                # segment selector
                pl.BlockSpec((Bp, LW), lambda g: (0, 0)),                # segment broadcaster
                pl.BlockSpec((2 * Cout_p, T * Cin_p), lambda g: (0, 0)),  # w1 + wr fused
                pl.BlockSpec((Cout_p, T * Cout_p), lambda g: (0, 0)),    # w2
                pl.BlockSpec((Cout_p, 1), lambda g: (0, 0)),             # br (residual bias)
            ],
            out_specs=pl.BlockSpec((1, Cout_p, LW), lambda g: (g, 0, 0)),
            scratch_shapes=[pltpu.VMEM((T * Cmax_p, LW), MATMUL_DTYPE)],  # shared tap buffer
        ),
        compiler_params=pltpu.CompilerParams(
            dimension_semantics=("parallel",),
            vmem_limit_bytes=_vmem_limit_bytes(),
        ),
    )(prepared["prelu"], x, masks, seg, segT, w1r, w2, br)

    # (G, Cout_p, B*HW) -> NCHW; drop channel padding
    out = out.reshape(G, Cout_p, B, HW).transpose(0, 2, 1, 3).reshape(N, Cout_p, H, W)
    return out[:, :Cout]


# ---------------------------------------------------------------------------
# Pure-JAX reference (mirrors PyTorch semantics) for correctness checking
# ---------------------------------------------------------------------------
def _conv_ref(x_nhwc, w_oihw, b, pad):
    w_hwio = jnp.transpose(w_oihw, (2, 3, 1, 0))
    y = jax.lax.conv_general_dilated(
        x_nhwc, w_hwio, window_strides=(1, 1), padding=[(pad, pad), (pad, pad)],
        dimension_numbers=("NHWC", "HWIO", "NHWC"),
        precision=jax.lax.Precision.HIGHEST)
    return y + b[None, None, None, :]


def _instnorm_ref(y, eps=1e-5):
    mean = jnp.mean(y, axis=(1, 2), keepdims=True)
    var = jnp.mean((y - mean) ** 2, axis=(1, 2), keepdims=True)
    return (y - mean) * jax.lax.rsqrt(var + eps)


def _prelu_ref(y, a):
    return jnp.where(y >= 0.0, y, a * y)


def reference_forward(h, x_nchw, params, Cout, k=3):
    N, Cin, H, W = x_nchw.shape
    x_nhwc = jnp.transpose(x_nchw, (0, 2, 3, 1))

    def lin(Wl, bl):
        return jnp.dot(h, Wl.T, precision=jax.lax.Precision.HIGHEST) + bl

    w1 = lin(params["Ww1"], params["bw1"]).reshape(Cout, Cin, k, k)
    b1 = lin(params["Wb1"], params["bb1"])
    w2 = lin(params["Ww2"], params["bw2"]).reshape(Cout, Cout, k, k)
    b2 = lin(params["Wb2"], params["bb2"])
    wr = lin(params["Wwr"], params["bwr"]).reshape(Cout, Cin, 1, 1)
    br = lin(params["Wbr"], params["bbr"])

    y1 = _prelu_ref(_instnorm_ref(_conv_ref(x_nhwc, w1, b1, 1)), params["prelu_a1"])
    y2 = _prelu_ref(_instnorm_ref(_conv_ref(y1, w2, b2, 1)), params["prelu_a2"])
    res = _conv_ref(x_nhwc, wr, br, 0)
    return jnp.transpose(y2 + res, (0, 3, 1, 2))


# ---------------------------------------------------------------------------
if __name__ == "__main__":
    key = jax.random.PRNGKey(0)
    k = 3

    def make_params(kk, Cin, Cout, Fh):
        ks = jax.random.split(kk, 6)

        def init_linear(kkk, L, scale):
            k1, k2 = jax.random.split(kkk)
            return (jax.random.normal(k1, (L, Fh), jnp.float32) * scale,
                    jax.random.normal(k2, (L,), jnp.float32) * 0.01)

        s = 1.0 / np.sqrt(Fh)
        p = {}
        p["Ww1"], p["bw1"] = init_linear(ks[0], Cout * Cin * k * k, s)
        p["Wb1"], p["bb1"] = init_linear(ks[1], Cout, s)
        p["Ww2"], p["bw2"] = init_linear(ks[2], Cout * Cout * k * k, s)
        p["Wb2"], p["bb2"] = init_linear(ks[3], Cout, s)
        p["Wwr"], p["bwr"] = init_linear(ks[4], Cout * Cin, s)
        p["Wbr"], p["bbr"] = init_linear(ks[5], Cout, s)
        p["prelu_a1"] = jnp.float32(0.25)   # PyTorch PReLU default init
        p["prelu_a2"] = jnp.float32(0.25)
        return p

    configs = [
        # (N, Cin, Cout, H, W, Fh)
        (2, 4, 8, 16, 16, 32),     # the base case (B=2 lane batching, grid=1)
        (4, 6, 12, 16, 16, 32),    # Cin_p != Cout_p, B=4 lane batching (seam-mask test)
    ]
    for idx, (N, Cin, Cout, H, W, Fh) in enumerate(configs):
        kc, kx, kh, key = jax.random.split(key, 4)
        x_nchw = jax.random.normal(kx, (N, Cin, H, W), jnp.float32)
        hyper_tensor = jax.random.normal(kh, (Fh,), jnp.float32)
        params = make_params(kc, Cin, Cout, Fh)

        prepared = prepare_unit_params(params, Cin, Cout, k)   # one-time, out of fwd path
        fwd = jax.jit(lambda hh, xx, prepared=prepared:
                      hyper_residual_unit_forward(hh, xx, prepared))

        out = jax.block_until_ready(fwd(hyper_tensor, x_nchw))
        ref = jax.block_until_ready(reference_forward(hyper_tensor, x_nchw, params, Cout, k))

        assert out.shape == (N, Cout, H, W), out.shape
        if not bool(jnp.allclose(out, ref, atol=5e-3, rtol=5e-3)):
            raise AssertionError(
                f"config {idx}: mismatch, max abs err = "
                f"{float(jnp.max(jnp.abs(out - ref)))}"
            )

    print("KERNEL_OK")
</pallas_src>

<mosaic_0001>
module attributes {stable_mosaic.version = 11 : i64} {
  func.func @kernel(%arg0: i32, %arg1: memref<2xf32, #tpu.memory_space<smem>>, %arg2: memref<1x8x512xf32, #tpu.memory_space<vmem>>, %arg3: memref<9x512xf32, #tpu.memory_space<vmem>>, %arg4: memref<512x8xf32, #tpu.memory_space<vmem>>, %arg5: memref<8x512xf32, #tpu.memory_space<vmem>>, %arg6: memref<16x72xf32, #tpu.memory_space<vmem>>, %arg7: memref<8x72xf32, #tpu.memory_space<vmem>>, %arg8: memref<8x1xf32, #tpu.memory_space<vmem>>, %arg9: memref<1x8x512xf32, #tpu.memory_space<vmem>>, %arg10: memref<72x512xf32, #tpu.memory_space<vmem>>) attributes {dimension_semantics = [#tpu.dimension_semantics<parallel>], iteration_bounds = array<i64: 1>, scalar_prefetch = 0 : i64, scratch_operands = 1 : i64, tpu.core_type = #tpu.core_type<tc>, window_params = [{transform_indices = @transform_0, window_bounds = array<i64: 2>}, {transform_indices = @transform_1, window_bounds = array<i64: 1, 8, 512>}, {pipeline_mode = #tpu.pipeline_mode<synchronous>, transform_indices = @transform_2, window_bounds = array<i64: 9, 512>}, {pipeline_mode = #tpu.pipeline_mode<synchronous>, transform_indices = @transform_3, window_bounds = array<i64: 512, 8>}, {pipeline_mode = #tpu.pipeline_mode<synchronous>, transform_indices = @transform_4, window_bounds = array<i64: 8, 512>}, {pipeline_mode = #tpu.pipeline_mode<synchronous>, transform_indices = @transform_5, window_bounds = array<i64: 16, 72>}, {pipeline_mode = #tpu.pipeline_mode<synchronous>, transform_indices = @transform_6, window_bounds = array<i64: 8, 72>}, {pipeline_mode = #tpu.pipeline_mode<synchronous>, transform_indices = @transform_7, window_bounds = array<i64: 8, 1>}, {transform_indices = @transform_8, window_bounds = array<i64: 1, 8, 512>}]} {
    %c0 = arith.constant 0 : index
    %c0_0 = arith.constant 0 : index
    %0 = vector.load %arg3[%c0, %c0_0] : memref<9x512xf32, #tpu.memory_space<vmem>>, vector<9x512xf32>
    %c0_1 = arith.constant 0 : index
    %c0_2 = arith.constant 0 : index
    %1 = vector.load %arg4[%c0_1, %c0_2] : memref<512x8xf32, #tpu.memory_space<vmem>>, vector<512x8xf32>
    %c0_3 = arith.constant 0 : index
    %c0_4 = arith.constant 0 : index
    %2 = vector.load %arg5[%c0_3, %c0_4] : memref<8x512xf32, #tpu.memory_space<vmem>>, vector<8x512xf32>
    %c0_5 = arith.constant 0 : index
    %c0_6 = arith.constant 0 : index
    %c0_7 = arith.constant 0 : index
    %3 = vector.load %arg2[%c0_5, %c0_6, %c0_7] : memref<1x8x512xf32, #tpu.memory_space<vmem>>, vector<1x8x512xf32>
    %4 = vector.shape_cast %3 : vector<1x8x512xf32> to vector<8x512xf32>
    %c17_i32 = arith.constant 17 : i32
    %5 = tpu.dynamic_rotate %4 by %c17_i32 dim 1 : vector<8x512xf32>, i32 -> vector<8x512xf32>
    %6 = vector.extract_strided_slice %0 {offsets = [0, 0], sizes = [1, 512], strides = [1, 1]} : vector<9x512xf32> to vector<1x512xf32>
    %7 = vector.broadcast %6 : vector<1x512xf32> to vector<8x512xf32>
    %8 = arith.mulf %5, %7 : vector<8x512xf32>
    %c0_8 = arith.constant 0 : index
    %c0_9 = arith.constant 0 : index
    %9 = vector.load %arg10[%c0_8, %c0_9] : memref<72x512xf32, #tpu.memory_space<vmem>>, vector<8x512xf32>
    tpu.vector_store %arg10[%c0_8, %c0_9], %8 {strides = array<i32>} : memref<72x512xf32, #tpu.memory_space<vmem>>, vector<8x512xf32>,
    %c16_i32 = arith.constant 16 : i32
    %10 = tpu.dynamic_rotate %4 by %c16_i32 dim 1 : vector<8x512xf32>, i32 -> vector<8x512xf32>
    %11 = vector.extract_strided_slice %0 {offsets = [1, 0], sizes = [1, 512], strides = [1, 1]} : vector<9x512xf32> to vector<1x512xf32>
    %12 = vector.broadcast %11 : vector<1x512xf32> to vector<8x512xf32>
    %13 = arith.mulf %10, %12 : vector<8x512xf32>
    %c8 = arith.constant 8 : index
    %c0_10 = arith.constant 0 : index
    %14 = vector.load %arg10[%c8, %c0_10] : memref<72x512xf32, #tpu.memory_space<vmem>>, vector<8x512xf32>
    tpu.vector_store %arg10[%c8, %c0_10], %13 {strides = array<i32>} : memref<72x512xf32, #tpu.memory_space<vmem>>, vector<8x512xf32>,
    %c15_i32 = arith.constant 15 : i32
    %15 = tpu.dynamic_rotate %4 by %c15_i32 dim 1 : vector<8x512xf32>, i32 -> vector<8x512xf32>
    %16 = vector.extract_strided_slice %0 {offsets = [2, 0], sizes = [1, 512], strides = [1, 1]} : vector<9x512xf32> to vector<1x512xf32>
    %17 = vector.broadcast %16 : vector<1x512xf32> to vector<8x512xf32>
    %18 = arith.mulf %15, %17 : vector<8x512xf32>
    %c16 = arith.constant 16 : index
    %c0_11 = arith.constant 0 : index
    %19 = vector.load %arg10[%c16, %c0_11] : memref<72x512xf32, #tpu.memory_space<vmem>>, vector<8x512xf32>
    tpu.vector_store %arg10[%c16, %c0_11], %18 {strides = array<i32>} : memref<72x512xf32, #tpu.memory_space<vmem>>, vector<8x512xf32>,
    %c1_i32 = arith.constant 1 : i32
    %20 = tpu.dynamic_rotate %4 by %c1_i32 dim 1 : vector<8x512xf32>, i32 -> vector<8x512xf32>
    %21 = vector.extract_strided_slice %0 {offsets = [3, 0], sizes = [1, 512], strides = [1, 1]} : vector<9x512xf32> to vector<1x512xf32>
    %22 = vector.broadcast %21 : vector<1x512xf32> to vector<8x512xf32>
    %23 = arith.mulf %20, %22 : vector<8x512xf32>
    %c24 = arith.constant 24 : index
    %c0_12 = arith.constant 0 : index
    %24 = vector.load %arg10[%c24, %c0_12] : memref<72x512xf32, #tpu.memory_space<vmem>>, vector<8x512xf32>
    tpu.vector_store %arg10[%c24, %c0_12], %23 {strides = array<i32>} : memref<72x512xf32, #tpu.memory_space<vmem>>, vector<8x512xf32>,
    %25 = vector.extract_strided_slice %0 {offsets = [4, 0], sizes = [1, 512], strides = [1, 1]} : vector<9x512xf32> to vector<1x512xf32>
    %26 = vector.broadcast %25 : vector<1x512xf32> to vector<8x512xf32>
    %27 = arith.mulf %4, %26 : vector<8x512xf32>
    %c32 = arith.constant 32 : index
    %c0_13 = arith.constant 0 : index
    %28 = vector.load %arg10[%c32, %c0_13] : memref<72x512xf32, #tpu.memory_space<vmem>>, vector<8x512xf32>
    tpu.vector_store %arg10[%c32, %c0_13], %27 {strides = array<i32>} : memref<72x512xf32, #tpu.memory_space<vmem>>, vector<8x512xf32>,
    %c511_i32 = arith.constant 511 : i32
    %29 = tpu.dynamic_rotate %4 by %c511_i32 dim 1 : vector<8x512xf32>, i32 -> vector<8x512xf32>
    %30 = vector.extract_strided_slice %0 {offsets = [5, 0], sizes = [1, 512], strides = [1, 1]} : vector<9x512xf32> to vector<1x512xf32>
    %31 = vector.broadcast %30 : vector<1x512xf32> to vector<8x512xf32>
    %32 = arith.mulf %29, %31 : vector<8x512xf32>
    %c40 = arith.constant 40 : index
    %c0_14 = arith.constant 0 : index
    %33 = vector.load %arg10[%c40, %c0_14] : memref<72x512xf32, #tpu.memory_space<vmem>>, vector<8x512xf32>
    tpu.vector_store %arg10[%c40, %c0_14], %32 {strides = array<i32>} : memref<72x512xf32, #tpu.memory_space<vmem>>, vector<8x512xf32>,
    %c497_i32 = arith.constant 497 : i32
    %34 = tpu.dynamic_rotate %4 by %c497_i32 dim 1 : vector<8x512xf32>, i32 -> vector<8x512xf32>
    %35 = vector.extract_strided_slice %0 {offsets = [6, 0], sizes = [1, 512], strides = [1, 1]} : vector<9x512xf32> to vector<1x512xf32>
    %36 = vector.broadcast %35 : vector<1x512xf32> to vector<8x512xf32>
    %37 = arith.mulf %34, %36 : vector<8x512xf32>
    %c48 = arith.constant 48 : index
    %c0_15 = arith.constant 0 : index
    %38 = vector.load %arg10[%c48, %c0_15] : memref<72x512xf32, #tpu.memory_space<vmem>>, vector<8x512xf32>
    tpu.vector_store %arg10[%c48, %c0_15], %37 {strides = array<i32>} : memref<72x512xf32, #tpu.memory_space<vmem>>, vector<8x512xf32>,
    %c496_i32 = arith.constant 496 : i32
    %39 = tpu.dynamic_rotate %4 by %c496_i32 dim 1 : vector<8x512xf32>, i32 -> vector<8x512xf32>
    %40 = vector.extract_strided_slice %0 {offsets = [7, 0], sizes = [1, 512], strides = [1, 1]} : vector<9x512xf32> to vector<1x512xf32>
    %41 = vector.broadcast %40 : vector<1x512xf32> to vector<8x512xf32>
    %42 = arith.mulf %39, %41 : vector<8x512xf32>
    %c56 = arith.constant 56 : index
    %c0_16 = arith.constant 0 : index
    %43 = vector.load %arg10[%c56, %c0_16] : memref<72x512xf32, #tpu.memory_space<vmem>>, vector<8x512xf32>
    tpu.vector_store %arg10[%c56, %c0_16], %42 {strides = array<i32>} : memref<72x512xf32, #tpu.memory_space<vmem>>, vector<8x512xf32>,
    %c495_i32 = arith.constant 495 : i32
    %44 = tpu.dynamic_rotate %4 by %c495_i32 dim 1 : vector<8x512xf32>, i32 -> vector<8x512xf32>
    %45 = vector.extract_strided_slice %0 {offsets = [8, 0], sizes = [1, 512], strides = [1, 1]} : vector<9x512xf32> to vector<1x512xf32>
    %46 = vector.broadcast %45 : vector<1x512xf32> to vector<8x512xf32>
    %47 = arith.mulf %44, %46 : vector<8x512xf32>
    %c64 = arith.constant 64 : index
    %c0_17 = arith.constant 0 : index
    %48 = vector.load %arg10[%c64, %c0_17] : memref<72x512xf32, #tpu.memory_space<vmem>>, vector<8x512xf32>
    tpu.vector_store %arg10[%c64, %c0_17], %47 {strides = array<i32>} : memref<72x512xf32, #tpu.memory_space<vmem>>, vector<8x512xf32>,
    %c0_18 = arith.constant 0 : index
    %c0_19 = arith.constant 0 : index
    %49 = vector.load %arg10[%c0_18, %c0_19] : memref<72x512xf32, #tpu.memory_space<vmem>>, vector<72x512xf32>
    %c0_20 = arith.constant 0 : index
    %c0_21 = arith.constant 0 : index
    %50 = vector.load %arg6[%c0_20, %c0_21] : memref<16x72xf32, #tpu.memory_space<vmem>>, vector<16x72xf32>
    %cst = arith.constant dense<0.000000e+00> : vector<16x512xf32>
    %51 = tpu.matmul %50, %49, %cst {dimension_numbers = #tpu.dot_dimension_numbers<[1], [0], [0], [1], [0, 0, 1, 1], [], []>} : vector<16x72xf32>, vector<72x512xf32>, vector<16x512xf32> -> vector<16x512xf32>
    %52 = vector.extract_strided_slice %51 {offsets = [0, 0], sizes = [8, 512], strides = [1, 1]} : vector<16x512xf32> to vector<8x512xf32>
    %c0_22 = arith.constant 0 : index
    %53 = memref.load %arg1[%c0_22] : memref<2xf32, #tpu.memory_space<smem>>
    %cst_23 = arith.constant dense<0.000000e+00> : vector<8x8xf32>
    %54 = tpu.matmul %52, %1, %cst_23 {dimension_numbers = #tpu.dot_dimension_numbers<[1], [0], [0], [1], [0, 0, 1, 1], [], []>} : vector<8x512xf32>, vector<512x8xf32>, vector<8x8xf32> -> vector<8x8xf32>
    %cst_24 = arith.constant 3.906250e-03 : f32
    %55 = vector.broadcast %cst_24 : f32 to vector<8x8xf32>
    %56 = arith.mulf %54, %55 : vector<8x8xf32>
    %cst_25 = arith.constant dense<0.000000e+00> : vector<8x512xf32>
    %57 = tpu.matmul %56, %2, %cst_25 {dimension_numbers = #tpu.dot_dimension_numbers<[1], [0], [0], [1], [0, 0, 1, 1], [], []>} : vector<8x8xf32>, vector<8x512xf32>, vector<8x512xf32> -> vector<8x512xf32>
    %58 = arith.subf %52, %57 : vector<8x512xf32>
    %59 = arith.mulf %58, %58 : vector<8x512xf32>
    %cst_26 = arith.constant dense<0.000000e+00> : vector<8x8xf32>
    %60 = tpu.matmul %59, %1, %cst_26 {dimension_numbers = #tpu.dot_dimension_numbers<[1], [0], [0], [1], [0, 0, 1, 1], [], []>} : vector<8x512xf32>, vector<512x8xf32>, vector<8x8xf32> -> vector<8x8xf32>
    %cst_27 = arith.constant 3.906250e-03 : f32
    %61 = vector.broadcast %cst_27 : f32 to vector<8x8xf32>
    %62 = arith.mulf %60, %61 : vector<8x8xf32>
    %cst_28 = arith.constant 9.99999974E-6 : f32
    %63 = vector.broadcast %cst_28 : f32 to vector<8x8xf32>
    %64 = arith.addf %62, %63 : vector<8x8xf32>
    %65 = math.rsqrt %64 : vector<8x8xf32>
    %cst_29 = arith.constant dense<0.000000e+00> : vector<8x512xf32>
    %66 = tpu.matmul %65, %2, %cst_29 {dimension_numbers = #tpu.dot_dimension_numbers<[1], [0], [0], [1], [0, 0, 1, 1], [], []>} : vector<8x8xf32>, vector<8x512xf32>, vector<8x512xf32> -> vector<8x512xf32>
    %67 = arith.mulf %58, %66 : vector<8x512xf32>
    %cst_30 = arith.constant 0.000000e+00 : f32
    %68 = vector.broadcast %cst_30 : f32 to vector<8x512xf32>
    %69 = arith.cmpf oge, %67, %68 : vector<8x512xf32>
    %70 = vector.broadcast %53 : f32 to vector<8x512xf32>
    %71 = arith.mulf %70, %67 : vector<8x512xf32>
    %72 = arith.select %69, %67, %71 : vector<8x512xi1>, vector<8x512xf32>
    %73 = vector.extract_strided_slice %51 {offsets = [8, 0], sizes = [8, 512], strides = [1, 1]} : vector<16x512xf32> to vector<8x512xf32>
    %c0_31 = arith.constant 0 : index
    %c0_32 = arith.constant 0 : index
    %74 = vector.load %arg8[%c0_31, %c0_32] : memref<8x1xf32, #tpu.memory_space<vmem>>, vector<8x1xf32>
    %75 = vector.broadcast %74 : vector<8x1xf32> to vector<8x512xf32>
    %76 = arith.addf %73, %75 : vector<8x512xf32>
    %c17_i32_33 = arith.constant 17 : i32
    %77 = tpu.dynamic_rotate %72 by %c17_i32_33 dim 1 : vector<8x512xf32>, i32 -> vector<8x512xf32>
    %78 = vector.extract_strided_slice %0 {offsets = [0, 0], sizes = [1, 512], strides = [1, 1]} : vector<9x512xf32> to vector<1x512xf32>
    %79 = vector.broadcast %78 : vector<1x512xf32> to vector<8x512xf32>
    %80 = arith.mulf %77, %79 : vector<8x512xf32>
    %c0_34 = arith.constant 0 : index
    %c0_35 = arith.constant 0 : index
    %81 = vector.load %arg10[%c0_34, %c0_35] : memref<72x512xf32, #tpu.memory_space<vmem>>, vector<8x512xf32>
    tpu.vector_store %arg10[%c0_34, %c0_35], %80 {strides = array<i32>} : memref<72x512xf32, #tpu.memory_space<vmem>>, vector<8x512xf32>,
    %c16_i32_36 = arith.constant 16 : i32
    %82 = tpu.dynamic_rotate %72 by %c16_i32_36 dim 1 : vector<8x512xf32>, i32 -> vector<8x512xf32>
    %83 = vector.extract_strided_slice %0 {offsets = [1, 0], sizes = [1, 512], strides = [1, 1]} : vector<9x512xf32> to vector<1x512xf32>
    %84 = vector.broadcast %83 : vector<1x512xf32> to vector<8x512xf32>
    %85 = arith.mulf %82, %84 : vector<8x512xf32>
    %c8_37 = arith.constant 8 : index
    %c0_38 = arith.constant 0 : index
    %86 = vector.load %arg10[%c8_37, %c0_38] : memref<72x512xf32, #tpu.memory_space<vmem>>, vector<8x512xf32>
    tpu.vector_store %arg10[%c8_37, %c0_38], %85 {strides = array<i32>} : memref<72x512xf32, #tpu.memory_space<vmem>>, vector<8x512xf32>,
    %c15_i32_39 = arith.constant 15 : i32
    %87 = tpu.dynamic_rotate %72 by %c15_i32_39 dim 1 : vector<8x512xf32>, i32 -> vector<8x512xf32>
    %88 = vector.extract_strided_slice %0 {offsets = [2, 0], sizes = [1, 512], strides = [1, 1]} : vector<9x512xf32> to vector<1x512xf32>
    %89 = vector.broadcast %88 : vector<1x512xf32> to vector<8x512xf32>
    %90 = arith.mulf %87, %89 : vector<8x512xf32>
    %c16_40 = arith.constant 16 : index
    %c0_41 = arith.constant 0 : index
    %91 = vector.load %arg10[%c16_40, %c0_41] : memref<72x512xf32, #tpu.memory_space<vmem>>, vector<8x512xf32>
    tpu.vector_store %arg10[%c16_40, %c0_41], %90 {strides = array<i32>} : memref<72x512xf32, #tpu.memory_space<vmem>>, vector<8x512xf32>,
    %c1_i32_42 = arith.constant 1 : i32
    %92 = tpu.dynamic_rotate %72 by %c1_i32_42 dim 1 : vector<8x512xf32>, i32 -> vector<8x512xf32>
    %93 = vector.extract_strided_slice %0 {offsets = [3, 0], sizes = [1, 512], strides = [1, 1]} : vector<9x512xf32> to vector<1x512xf32>
    %94 = vector.broadcast %93 : vector<1x512xf32> to vector<8x512xf32>
    %95 = arith.mulf %92, %94 : vector<8x512xf32>
    %c24_43 = arith.constant 24 : index
    %c0_44 = arith.constant 0 : index
    %96 = vector.load %arg10[%c24_43, %c0_44] : memref<72x512xf32, #tpu.memory_space<vmem>>, vector<8x512xf32>
    tpu.vector_store %arg10[%c24_43, %c0_44], %95 {strides = array<i32>} : memref<72x512xf32, #tpu.memory_space<vmem>>, vector<8x512xf32>,
    %97 = vector.extract_strided_slice %0 {offsets = [4, 0], sizes = [1, 512], strides = [1, 1]} : vector<9x512xf32> to vector<1x512xf32>
    %98 = vector.broadcast %97 : vector<1x512xf32> to vector<8x512xf32>
    %99 = arith.mulf %72, %98 : vector<8x512xf32>
    %c32_45 = arith.constant 32 : index
    %c0_46 = arith.constant 0 : index
    %100 = vector.load %arg10[%c32_45, %c0_46] : memref<72x512xf32, #tpu.memory_space<vmem>>, vector<8x512xf32>
    tpu.vector_store %arg10[%c32_45, %c0_46], %99 {strides = array<i32>} : memref<72x512xf32, #tpu.memory_space<vmem>>, vector<8x512xf32>,
    %c511_i32_47 = arith.constant 511 : i32
    %101 = tpu.dynamic_rotate %72 by %c511_i32_47 dim 1 : vector<8x512xf32>, i32 -> vector<8x512xf32>
    %102 = vector.extract_strided_slice %0 {offsets = [5, 0], sizes = [1, 512], strides = [1, 1]} : vector<9x512xf32> to vector<1x512xf32>
    %103 = vector.broadcast %102 : vector<1x512xf32> to vector<8x512xf32>
    %104 = arith.mulf %101, %103 : vector<8x512xf32>
    %c40_48 = arith.constant 40 : index
    %c0_49 = arith.constant 0 : index
    %105 = vector.load %arg10[%c40_48, %c0_49] : memref<72x512xf32, #tpu.memory_space<vmem>>, vector<8x512xf32>
    tpu.vector_store %arg10[%c40_48, %c0_49], %104 {strides = array<i32>} : memref<72x512xf32, #tpu.memory_space<vmem>>, vector<8x512xf32>,
    %c497_i32_50 = arith.constant 497 : i32
    %106 = tpu.dynamic_rotate %72 by %c497_i32_50 dim 1 : vector<8x512xf32>, i32 -> vector<8x512xf32>
    %107 = vector.extract_strided_slice %0 {offsets = [6, 0], sizes = [1, 512], strides = [1, 1]} : vector<9x512xf32> to vector<1x512xf32>
    %108 = vector.broadcast %107 : vector<1x512xf32> to vector<8x512xf32>
    %109 = arith.mulf %106, %108 : vector<8x512xf32>
    %c48_51 = arith.constant 48 : index
    %c0_52 = arith.constant 0 : index
    %110 = vector.load %arg10[%c48_51, %c0_52] : memref<72x512xf32, #tpu.memory_space<vmem>>, vector<8x512xf32>
    tpu.vector_store %arg10[%c48_51, %c0_52], %109 {strides = array<i32>} : memref<72x512xf32, #tpu.memory_space<vmem>>, vector<8x512xf32>,
    %c496_i32_53 = arith.constant 496 : i32
    %111 = tpu.dynamic_rotate %72 by %c496_i32_53 dim 1 : vector<8x512xf32>, i32 -> vector<8x512xf32>
    %112 = vector.extract_strided_slice %0 {offsets = [7, 0], sizes = [1, 512], strides = [1, 1]} : vector<9x512xf32> to vector<1x512xf32>
    %113 = vector.broadcast %112 : vector<1x512xf32> to vector<8x512xf32>
    %114 = arith.mulf %111, %113 : vector<8x512xf32>
    %c56_54 = arith.constant 56 : index
    %c0_55 = arith.constant 0 : index
    %115 = vector.load %arg10[%c56_54, %c0_55] : memref<72x512xf32, #tpu.memory_space<vmem>>, vector<8x512xf32>
    tpu.vector_store %arg10[%c56_54, %c0_55], %114 {strides = array<i32>} : memref<72x512xf32, #tpu.memory_space<vmem>>, vector<8x512xf32>,
    %c495_i32_56 = arith.constant 495 : i32
    %116 = tpu.dynamic_rotate %72 by %c495_i32_56 dim 1 : vector<8x512xf32>, i32 -> vector<8x512xf32>
    %117 = vector.extract_strided_slice %0 {offsets = [8, 0], sizes = [1, 512], strides = [1, 1]} : vector<9x512xf32> to vector<1x512xf32>
    %118 = vector.broadcast %117 : vector<1x512xf32> to vector<8x512xf32>
    %119 = arith.mulf %116, %118 : vector<8x512xf32>
    %c64_57 = arith.constant 64 : index
    %c0_58 = arith.constant 0 : index
    %120 = vector.load %arg10[%c64_57, %c0_58] : memref<72x512xf32, #tpu.memory_space<vmem>>, vector<8x512xf32>
    tpu.vector_store %arg10[%c64_57, %c0_58], %119 {strides = array<i32>} : memref<72x512xf32, #tpu.memory_space<vmem>>, vector<8x512xf32>,
    %c0_59 = arith.constant 0 : index
    %c0_60 = arith.constant 0 : index
    %121 = vector.load %arg10[%c0_59, %c0_60] : memref<72x512xf32, #tpu.memory_space<vmem>>, vector<72x512xf32>
    %c0_61 = arith.constant 0 : index
    %c0_62 = arith.constant 0 : index
    %122 = vector.load %arg7[%c0_61, %c0_62] : memref<8x72xf32, #tpu.memory_space<vmem>>, vector<8x72xf32>
    %cst_63 = arith.constant dense<0.000000e+00> : vector<8x512xf32>
    %123 = tpu.matmul %122, %121, %cst_63 {dimension_numbers = #tpu.dot_dimension_numbers<[1], [0], [0], [1], [0, 0, 1, 1], [], []>} : vector<8x72xf32>, vector<72x512xf32>, vector<8x512xf32> -> vector<8x512xf32>
    %c1 = arith.constant 1 : index
    %124 = memref.load %arg1[%c1] : memref<2xf32, #tpu.memory_space<smem>>
    %cst_64 = arith.constant dense<0.000000e+00> : vector<8x8xf32>
    %125 = tpu.matmul %123, %1, %cst_64 {dimension_numbers = #tpu.dot_dimension_numbers<[1], [0], [0], [1], [0, 0, 1, 1], [], []>} : vector<8x512xf32>, vector<512x8xf32>, vector<8x8xf32> -> vector<8x8xf32>
    %cst_65 = arith.constant 3.906250e-03 : f32
    %126 = vector.broadcast %cst_65 : f32 to vector<8x8xf32>
    %127 = arith.mulf %125, %126 : vector<8x8xf32>
    %cst_66 = arith.constant dense<0.000000e+00> : vector<8x512xf32>
    %128 = tpu.matmul %127, %2, %cst_66 {dimension_numbers = #tpu.dot_dimension_numbers<[1], [0], [0], [1], [0, 0, 1, 1], [], []>} : vector<8x8xf32>, vector<8x512xf32>, vector<8x512xf32> -> vector<8x512xf32>
    %129 = arith.subf %123, %128 : vector<8x512xf32>
    %130 = arith.mulf %129, %129 : vector<8x512xf32>
    %cst_67 = arith.constant dense<0.000000e+00> : vector<8x8xf32>
    %131 = tpu.matmul %130, %1, %cst_67 {dimension_numbers = #tpu.dot_dimension_numbers<[1], [0], [0], [1], [0, 0, 1, 1], [], []>} : vector<8x512xf32>, vector<512x8xf32>, vector<8x8xf32> -> vector<8x8xf32>
    %cst_68 = arith.constant 3.906250e-03 : f32
    %132 = vector.broadcast %cst_68 : f32 to vector<8x8xf32>
    %133 = arith.mulf %131, %132 : vector<8x8xf32>
    %cst_69 = arith.constant 9.99999974E-6 : f32
    %134 = vector.broadcast %cst_69 : f32 to vector<8x8xf32>
    %135 = arith.addf %133, %134 : vector<8x8xf32>
    %136 = math.rsqrt %135 : vector<8x8xf32>
    %cst_70 = arith.constant dense<0.000000e+00> : vector<8x512xf32>
    %137 = tpu.matmul %136, %2, %cst_70 {dimension_numbers = #tpu.dot_dimension_numbers<[1], [0], [0], [1], [0, 0, 1, 1], [], []>} : vector<8x8xf32>, vector<8x512xf32>, vector<8x512xf32> -> vector<8x512xf32>
    %138 = arith.mulf %129, %137 : vector<8x512xf32>
    %cst_71 = arith.constant 0.000000e+00 : f32
    %139 = vector.broadcast %cst_71 : f32 to vector<8x512xf32>
    %140 = arith.cmpf oge, %138, %139 : vector<8x512xf32>
    %141 = vector.broadcast %124 : f32 to vector<8x512xf32>
    %142 = arith.mulf %141, %138 : vector<8x512xf32>
    %143 = arith.select %140, %138, %142 : vector<8x512xi1>, vector<8x512xf32>
    %144 = arith.addf %143, %76 : vector<8x512xf32>
    %c0_72 = arith.constant 0 : index
    %c0_73 = arith.constant 0 : index
    %c0_74 = arith.constant 0 : index
    %145 = vector.load %arg9[%c0_72, %c0_73, %c0_74] : memref<1x8x512xf32, #tpu.memory_space<vmem>>, vector<1x8x512xf32>
    %146 = vector.shape_cast %145 : vector<1x8x512xf32> to vector<8x512xf32>
    %147 = vector.shape_cast %144 : vector<8x512xf32> to vector<1x8x512xf32>
    tpu.vector_store %arg9[%c0_72, %c0_73, %c0_74], %147 {strides = array<i32>} : memref<1x8x512xf32, #tpu.memory_space<vmem>>, vector<1x8x512xf32>,
    return
  }
  func.func @transform_0(%arg0: i32) -> i32 {
    %c0_i32 = arith.constant 0 : i32
    %c0_i32_0 = arith.constant 0 : i32
    return %c0_i32 : i32
  }
  func.func @transform_1(%arg0: i32) -> (i32, i32, i32) {
    %c0_i32 = arith.constant 0 : i32
    %c0_i32_0 = arith.constant 0 : i32
    %c0_i32_1 = arith.constant 0 : i32
    return %arg0, %c0_i32, %c0_i32_0 : i32, i32, i32
  }
  func.func @transform_2(%arg0: i32) -> (i32, i32) {
    %c0_i32 = arith.constant 0 : i32
    %c0_i32_0 = arith.constant 0 : i32
    %c0_i32_1 = arith.constant 0 : i32
    return %c0_i32, %c0_i32_0 : i32, i32
  }
  func.func @transform_3(%arg0: i32) -> (i32, i32) {
    %c0_i32 = arith.constant 0 : i32
    %c0_i32_0 = arith.constant 0 : i32
    %c0_i32_1 = arith.constant 0 : i32
    return %c0_i32, %c0_i32_0 : i32, i32
  }
  func.func @transform_4(%arg0: i32) -> (i32, i32) {
    %c0_i32 = arith.constant 0 : i32
    %c0_i32_0 = arith.constant 0 : i32
    %c0_i32_1 = arith.constant 0 : i32
    return %c0_i32, %c0_i32_0 : i32, i32
  }
  func.func @transform_5(%arg0: i32) -> (i32, i32) {
    %c0_i32 = arith.constant 0 : i32
    %c0_i32_0 = arith.constant 0 : i32
    %c0_i32_1 = arith.constant 0 : i32
    return %c0_i32, %c0_i32_0 : i32, i32
  }
  func.func @transform_6(%arg0: i32) -> (i32, i32) {
    %c0_i32 = arith.constant 0 : i32
    %c0_i32_0 = arith.constant 0 : i32
    %c0_i32_1 = arith.constant 0 : i32
    return %c0_i32, %c0_i32_0 : i32, i32
  }
  func.func @transform_7(%arg0: i32) -> (i32, i32) {
    %c0_i32 = arith.constant 0 : i32
    %c0_i32_0 = arith.constant 0 : i32
    %c0_i32_1 = arith.constant 0 : i32
    return %c0_i32, %c0_i32_0 : i32, i32
  }
  func.func @transform_8(%arg0: i32) -> (i32, i32, i32) {
    %c0_i32 = arith.constant 0 : i32
    %c0_i32_0 = arith.constant 0 : i32
    %c0_i32_1 = arith.constant 0 : i32
    return %arg0, %c0_i32, %c0_i32_0 : i32, i32, i32
  }
}

</mosaic_0001>

<llo_original>
// kernel: _lambda_.1
$region0: #{_lambda_.1}
  #allocation0 [shape = 'u32[]', space=smem, size = 0x4, offset = 0x4, fixed_abs, tag = 'smem constant byte address 0x4 - core index']
  #allocation1 [shape = 'u32[144,128]{1,0:T(1,128)}', space=vmem, size = 0x12000, scoped, tag = 'internal scratch']
  #allocation2 [shape = 'f32[72,512]{1,0:T(8,128)}', space=vmem, size = 0x24000, scoped, tag = 'scratch operand']
  %s0 = inlined_call_operand.vmem [shape: f32[2], index: 0, kind: input, shape index: {}]
  %s1 = inlined_call_operand.vmem [shape: f32[1,8,512], index: 1, kind: input, shape index: {}]
  %s2 = inlined_call_operand.vmem [shape: f32[9,512], index: 2, kind: input, shape index: {}]
  %s3 = inlined_call_operand.vmem [shape: f32[512,8], index: 3, kind: input, shape index: {}]
  %s4 = inlined_call_operand.vmem [shape: f32[8,512], index: 4, kind: input, shape index: {}]
  %s5 = inlined_call_operand.vmem [shape: f32[16,72], index: 5, kind: input, shape index: {}]
  %s6 = inlined_call_operand.vmem [shape: f32[8,72], index: 6, kind: input, shape index: {}]
  %s7 = inlined_call_operand.vmem [shape: f32[8,1], index: 7, kind: input, shape index: {}]
  %s8 = inlined_call_operand.vmem [shape: f32[1,8,512], index: 8, kind: output, shape index: {}]
  %s9 = sld [smem:[#allocation0]]
  $region46: #{_lambda_.1} parent=0
    _
  %s11 = ssub.s32 1, %s9
  %s12 = scalar_select 0, %s11, %s9
  $region1: #{_lambda_.1} parent=0
    #allocation3 [shape = 'u8[512]{0}', space=smem, size = 0x200, scoped, tag = 'input window, operand 0, single buffered']
    #allocation4 [shape = 's32[1]{0}', space=sflag, size = 0x4, scoped, tag = 'scoped memory for _lambda_.1']
    %13 = vsyncpa [#allocation4], 0
    // Predicated region
    $region2: #{_lambda_.1} parent=1 // pred_check
      _
    $region3: #{_lambda_.1} parent=1 // pred_check_branch
      %15 = sbr.rel (0) target = $region5
    $region4: #{_lambda_.1} parent=1 // pred_region
      %s17 = ssub.s32 16, 16
      %18 = vsyncadd [#allocation4], %s17
      %s20 = sshll.u32 %s0, 4
      %s21 = int_to_ptr.vmem [resolvable:$true] %s20
      %23 = dma.vmem_to_smem %s21, 16, [#allocation3], [#allocation4]
    $region5: #{_lambda_.1} parent=1 // pred_fallthru
      _
    // Predicated region
    $region6: #{_lambda_.1} parent=1 // pred_check
      _
    $region7: #{_lambda_.1} parent=1 // pred_check_branch
      %25 = sbr.rel (0) target = $region9
    $region8: #{_lambda_.1} parent=1 // pred_region
      _
    $region9: #{_lambda_.1} parent=1 // pred_fallthru
      _
    // Predicated region
    $region10: #{_lambda_.1} parent=1 // pred_check
      _
    $region11: #{_lambda_.1} parent=1 // pred_check_branch
      %27 = sbr.rel (0) target = $region13
    $region12: #{_lambda_.1} parent=1 // pred_region
      _
    $region13: #{_lambda_.1} parent=1 // pred_fallthru
      _
    // Predicated region
    $region14: #{_lambda_.1} parent=1 // pred_check
      _
    $region15: #{_lambda_.1} parent=1 // pred_check_branch
      %29 = sbr.rel (0) target = $region17
    $region16: #{_lambda_.1} parent=1 // pred_region
      _
    $region17: #{_lambda_.1} parent=1 // pred_fallthru
      _
    // Predicated region
    $region18: #{_lambda_.1} parent=1 // pred_check
      _
    $region19: #{_lambda_.1} parent=1 // pred_check_branch
      %31 = sbr.rel (0) target = $region21
    $region20: #{_lambda_.1} parent=1 // pred_region
      _
    $region21: #{_lambda_.1} parent=1 // pred_fallthru
      _
    // Predicated region
    $region22: #{_lambda_.1} parent=1 // pred_check
      _
    $region23: #{_lambda_.1} parent=1 // pred_check_branch
      %33 = sbr.rel (0) target = $region25
    $region24: #{_lambda_.1} parent=1 // pred_region
      _
    $region25: #{_lambda_.1} parent=1 // pred_fallthru
      _
    // Predicated region
    $region26: #{_lambda_.1} parent=1 // pred_check
      _
    $region27: #{_lambda_.1} parent=1 // pred_check_branch
      %35 = sbr.rel (0) target = $region29
    $region28: #{_lambda_.1} parent=1 // pred_region
      _
    $region29: #{_lambda_.1} parent=1 // pred_fallthru
      _
    // Predicated region
    $region30: #{_lambda_.1} parent=1 // pred_check
      _
    $region31: #{_lambda_.1} parent=1 // pred_check_branch
      %37 = sbr.rel (0) target = $region33
    $region32: #{_lambda_.1} parent=1 // pred_region
      _
    $region33: #{_lambda_.1} parent=1 // pred_fallthru
      _
    // Predicated region
    $region34: #{_lambda_.1} parent=1 // pred_check
      _
    $region35: #{_lambda_.1} parent=1 // pred_check_branch
      %39 = sbr.rel (0) target = $region37
    $region36: #{_lambda_.1} parent=1 // pred_region
      %40 = dma.done [#allocation4], 16
    $region37: #{_lambda_.1} parent=1 // pred_fallthru
      _
    %41 = sfence
    %v42 = vld [vmem:[%s2] sm:$0xff]
    %v43 = vld [vmem:[%s2 + $0x8] sm:$0xff]
    %v44 = vld [vmem:[%s2 + $0x10] sm:$0xff]
    %v45 = vld [vmem:[%s2 + $0x18] sm:$0xff]
    %v46 = vld [vmem:[%s2 + $0x20] sm:$0x1]
    %v47 = vld [vmem:[%s2 + $0x28] sm:$0x1]
    %v48 = vld [vmem:[%s2 + $0x30] sm:$0x1]
    %v49 = vld [vmem:[%s2 + $0x38] sm:$0x1]
    %v50 = vld [vmem:[%s3] sm:$0xff]
    %v51 = vld [vmem:[%s3 + $0x8] sm:$0xff]
    %v52 = vld [vmem:[%s3 + $0x10] sm:$0xff]
    %v53 = vld [vmem:[%s3 + $0x18] sm:$0xff]
    %v54 = vld [vmem:[%s3 + $0x20] sm:$0xff]
    %v55 = vld [vmem:[%s3 + $0x28] sm:$0xff]
    %v56 = vld [vmem:[%s3 + $0x30] sm:$0xff]
    %v57 = vld [vmem:[%s3 + $0x38] sm:$0xff]
    %v58 = vld [vmem:[%s3 + $0x40] sm:$0xff]
    %v59 = vld [vmem:[%s3 + $0x48] sm:$0xff]
    %v60 = vld [vmem:[%s3 + $0x50] sm:$0xff]
    %v61 = vld [vmem:[%s3 + $0x58] sm:$0xff]
    %v62 = vld [vmem:[%s3 + $0x60] sm:$0xff]
    %v63 = vld [vmem:[%s3 + $0x68] sm:$0xff]
    %v64 = vld [vmem:[%s3 + $0x70] sm:$0xff]
    %v65 = vld [vmem:[%s3 + $0x78] sm:$0xff]
    %v66 = vld [vmem:[%s3 + $0x80] sm:$0xff]
    %v67 = vld [vmem:[%s3 + $0x88] sm:$0xff]
    %v68 = vld [vmem:[%s3 + $0x90] sm:$0xff]
    %v69 = vld [vmem:[%s3 + $0x98] sm:$0xff]
    %v70 = vld [vmem:[%s3 + $0xa0] sm:$0xff]
    %v71 = vld [vmem:[%s3 + $0xa8] sm:$0xff]
    %v72 = vld [vmem:[%s3 + $0xb0] sm:$0xff]
    %v73 = vld [vmem:[%s3 + $0xb8] sm:$0xff]
    %v74 = vld [vmem:[%s3 + $0xc0] sm:$0xff]
    %v75 = vld [vmem:[%s3 + $0xc8] sm:$0xff]
    %v76 = vld [vmem:[%s3 + $0xd0] sm:$0xff]
    %v77 = vld [vmem:[%s3 + $0xd8] sm:$0xff]
    %v78 = vld [vmem:[%s3 + $0xe0] sm:$0xff]
    %v79 = vld [vmem:[%s3 + $0xe8] sm:$0xff]
    %v80 = vld [vmem:[%s3 + $0xf0] sm:$0xff]
    %v81 = vld [vmem:[%s3 + $0xf8] sm:$0xff]
    %v82 = vld [vmem:[%s3 + $0x100] sm:$0xff]
    %v83 = vld [vmem:[%s3 + $0x108] sm:$0xff]
    %v84 = vld [vmem:[%s3 + $0x110] sm:$0xff]
    %v85 = vld [vmem:[%s3 + $0x118] sm:$0xff]
    %v86 = vld [vmem:[%s3 + $0x120] sm:$0xff]
    %v87 = vld [vmem:[%s3 + $0x128] sm:$0xff]
    %v88 = vld [vmem:[%s3 + $0x130] sm:$0xff]
    %v89 = vld [vmem:[%s3 + $0x138] sm:$0xff]
    %v90 = vld [vmem:[%s3 + $0x140] sm:$0xff]
    %v91 = vld [vmem:[%s3 + $0x148] sm:$0xff]
    %v92 = vld [vmem:[%s3 + $0x150] sm:$0xff]
    %v93 = vld [vmem:[%s3 + $0x158] sm:$0xff]
    %v94 = vld [vmem:[%s3 + $0x160] sm:$0xff]
    %v95 = vld [vmem:[%s3 + $0x168] sm:$0xff]
    %v96 = vld [vmem:[%s3 + $0x170] sm:$0xff]
    %v97 = vld [vmem:[%s3 + $0x178] sm:$0xff]
    %v98 = vld [vmem:[%s3 + $0x180] sm:$0xff]
    %v99 = vld [vmem:[%s3 + $0x188] sm:$0xff]
    %v100 = vld [vmem:[%s3 + $0x190] sm:$0xff]
    %v101 = vld [vmem:[%s3 + $0x198] sm:$0xff]
    %v102 = vld [vmem:[%s3 + $0x1a0] sm:$0xff]
    %v103 = vld [vmem:[%s3 + $0x1a8] sm:$0xff]
    %v104 = vld [vmem:[%s3 + $0x1b0] sm:$0xff]
    %v105 = vld [vmem:[%s3 + $0x1b8] sm:$0xff]
    %v106 = vld [vmem:[%s3 + $0x1c0] sm:$0xff]
    %v107 = vld [vmem:[%s3 + $0x1c8] sm:$0xff]
    %v108 = vld [vmem:[%s3 + $0x1d0] sm:$0xff]
    %v109 = vld [vmem:[%s3 + $0x1d8] sm:$0xff]
    %v110 = vld [vmem:[%s3 + $0x1e0] sm:$0xff]
    %v111 = vld [vmem:[%s3 + $0x1e8] sm:$0xff]
    %v112 = vld [vmem:[%s3 + $0x1f0] sm:$0xff]
    %v113 = vld [vmem:[%s3 + $0x1f8] sm:$0xff]
    %v114 = vld [vmem:[%s4] sm:$0xff]
    %v115 = vld [vmem:[%s4 + $0x8] sm:$0xff]
    %v116 = vld [vmem:[%s4 + $0x10] sm:$0xff]
    %v117 = vld [vmem:[%s4 + $0x18] sm:$0xff]
    %v118 = vld [vmem:[%s1] sm:$0xff]
    %v119 = vld [vmem:[%s1 + $0x8] sm:$0xff]
    %v120 = vld [vmem:[%s1 + $0x10] sm:$0xff]
    %v121 = vld [vmem:[%s1 + $0x18] sm:$0xff]
    %122 = vrot.lane.b32.xlu0 %v118, 17
    %v123 = vpop.permute.xlu0 %122
    %124 = vrot.lane.b32.xlu0 %v119, 17
    %v125 = vpop.permute.xlu0 %124
    %126 = vrot.lane.b32.xlu0 %v120, 17
    %v127 = vpop.permute.xlu0 %126
    %128 = vrot.lane.b32.xlu0 %v121, 17
    %v129 = vpop.permute.xlu0 %128
    %v130 = vlaneseq
    %v131 = vand.u32 %v130, 127
    %vm132 = vcmp.lt.s32.totalorder %v131, 17
    %v133 = vsel %vm132, %v127, %v129
    %v134 = vsel %vm132, %v125, %v127
    %v135 = vsel %vm132, %v123, %v125
    %v136 = vsel %vm132, %v129, %v123
    %v137 = vlaneseq
    %v138 = vshrl.u32 %v137, 7
    %v139 = vsub.s32 0, %v138
    %v140 = vrot.slane %v42, %v139
    %v141 = vlaneseq
    %v142 = vshrl.u32 %v141, 7
    %v143 = vsub.s32 0, %v142
    %v144 = vrot.slane %v43, %v143
    %v145 = vlaneseq
    %v146 = vshrl.u32 %v145, 7
    %v147 = vsub.s32 0, %v146
    %v148 = vrot.slane %v44, %v147
    %v149 = vlaneseq
    %v150 = vshrl.u32 %v149, 7
    %v151 = vsub.s32 0, %v150
    %v152 = vrot.slane %v45, %v151
    %v153 = vmul.f32 %v136, %v140
    %v154 = vmul.f32 %v135, %v144
    %v155 = vmul.f32 %v134, %v148
    %v156 = vmul.f32 %v133, %v152
    %157 = vst [vmem:[#allocation2] sm:$0xff] %v153
    %158 = vst [vmem:[#allocation2 + $0x8] sm:$0xff] %v154
    %159 = vst [vmem:[#allocation2 + $0x10] sm:$0xff] %v155
    %160 = vst [vmem:[#allocation2 + $0x18] sm:$0xff] %v156
    %161 = vrot.lane.b32.xlu0 %v118, 16
    %v162 = vpop.permute.xlu0 %161
    %163 = vrot.lane.b32.xlu0 %v119, 16
    %v164 = vpop.permute.xlu0 %163
    %165 = vrot.lane.b32.xlu0 %v120, 16
    %v166 = vpop.permute.xlu0 %165
    %167 = vrot.lane.b32.xlu0 %v121, 16
    %v168 = vpop.permute.xlu0 %167
    %vm169 = vcmp.lt.s32.totalorder %v131, 16
    %v170 = vsel %vm169, %v166, %v168
    %v171 = vsel %vm169, %v164, %v166
    %v172 = vsel %vm169, %v162, %v164
    %v173 = vsel %vm169, %v168, %v162
    %v174 = vlaneseq
    %v175 = vshrl.u32 %v174, 7
    %v176 = vsub.s32 1, %v175
    %v177 = vrot.slane %v42, %v176
    %v178 = vlaneseq
    %v179 = vshrl.u32 %v178, 7
    %v180 = vsub.s32 1, %v179
    %v181 = vrot.slane %v43, %v180
    %v182 = vlaneseq
    %v183 = vshrl.u32 %v182, 7
    %v184 = vsub.s32 1, %v183
    %v185 = vrot.slane %v44, %v184
    %v186 = vlaneseq
    %v187 = vshrl.u32 %v186, 7
    %v188 = vsub.s32 1, %v187
    %v189 = vrot.slane %v45, %v188
    %v190 = vmul.f32 %v173, %v177
    %v191 = vmul.f32 %v172, %v181
    %v192 = vmul.f32 %v171, %v185
    %v193 = vmul.f32 %v170, %v189
    %194 = vst [vmem:[#allocation2 + $0x20] sm:$0xff] %v190
    %195 = vst [vmem:[#allocation2 + $0x28] sm:$0xff] %v191
    %196 = vst [vmem:[#allocation2 + $0x30] sm:$0xff] %v192
    %197 = vst [vmem:[#allocation2 + $0x38] sm:$0xff] %v193
    %198 = vrot.lane.b32.xlu0 %v118, 15
    %v199 = vpop.permute.xlu0 %198
    %200 = vrot.lane.b32.xlu0 %v119, 15
    %v201 = vpop.permute.xlu0 %200
    %202 = vrot.lane.b32.xlu0 %v120, 15
    %v203 = vpop.permute.xlu0 %202
    %204 = vrot.lane.b32.xlu0 %v121, 15
    %v205 = vpop.permute.xlu0 %204
    %vm206 = vcmp.lt.s32.totalorder %v131, 15
    %v207 = vsel %vm206, %v203, %v205
    %v208 = vsel %vm206, %v201, %v203
    %v209 = vsel %vm206, %v199, %v201
    %v210 = vsel %vm206, %v205, %v199
    %v211 = vlaneseq
    %v212 = vshrl.u32 %v211, 7
    %v213 = vsub.s32 2, %v212
    %v214 = vrot.slane %v42, %v213
    %v215 = vlaneseq
    %v216 = vshrl.u32 %v215, 7
    %v217 = vsub.s32 2, %v216
    %v218 = vrot.slane %v43, %v217
    %v219 = vlaneseq
    %v220 = vshrl.u32 %v219, 7
    %v221 = vsub.s32 2, %v220
    %v222 = vrot.slane %v44, %v221
    %v223 = vlaneseq
    %v224 = vshrl.u32 %v223, 7
    %v225 = vsub.s32 2, %v224
    %v226 = vrot.slane %v45, %v225
    %v227 = vmul.f32 %v210, %v214
    %v228 = vmul.f32 %v209, %v218
    %v229 = vmul.f32 %v208, %v222
    %v230 = vmul.f32 %v207, %v226
    %231 = vst [vmem:[#allocation2 + $0x40] sm:$0xff] %v227
    %232 = vst [vmem:[#allocation2 + $0x48] sm:$0xff] %v228
    %233 = vst [vmem:[#allocation2 + $0x50] sm:$0xff] %v229
    %234 = vst [vmem:[#allocation2 + $0x58] sm:$0xff] %v230
    %235 = vrot.lane.b32.xlu0 %v118, 1
    %v236 = vpop.permute.xlu0 %235
    %237 = vrot.lane.b32.xlu0 %v119, 1
    %v238 = vpop.permute.xlu0 %237
    %239 = vrot.lane.b32.xlu0 %v120, 1
    %v240 = vpop.permute.xlu0 %239
    %241 = vrot.lane.b32.xlu0 %v121, 1
    %v242 = vpop.permute.xlu0 %241
    %vm243 = vcmp.lt.s32.totalorder %v131, 1
    %v244 = vsel %vm243, %v240, %v242
    %v245 = vsel %vm243, %v238, %v240
    %v246 = vsel %vm243, %v236, %v238
    %v247 = vsel %vm243, %v242, %v236
    %v248 = vlaneseq
    %v249 = vshrl.u32 %v248, 7
    %v250 = vsub.s32 3, %v249
    %v251 = vrot.slane %v42, %v250
    %v252 = vlaneseq
    %v253 = vshrl.u32 %v252, 7
    %v254 = vsub.s32 3, %v253
    %v255 = vrot.slane %v43, %v254
    %v256 = vlaneseq
    %v257 = vshrl.u32 %v256, 7
    %v258 = vsub.s32 3, %v257
    %v259 = vrot.slane %v44, %v258
    %v260 = vlaneseq
    %v261 = vshrl.u32 %v260, 7
    %v262 = vsub.s32 3, %v261
    %v263 = vrot.slane %v45, %v262
    %v264 = vmul.f32 %v247, %v251
    %v265 = vmul.f32 %v246, %v255
    %v266 = vmul.f32 %v245, %v259
    %v267 = vmul.f32 %v244, %v263
    %268 = vst [vmem:[#allocation2 + $0x60] sm:$0xff] %v264
    %269 = vst [vmem:[#allocation2 + $0x68] sm:$0xff] %v265
    %270 = vst [vmem:[#allocation2 + $0x70] sm:$0xff] %v266
    %271 = vst [vmem:[#allocation2 + $0x78] sm:$0xff] %v267
    %v272 = vlaneseq
    %v273 = vshrl.u32 %v272, 7
    %v274 = vsub.s32 4, %v273
    %v275 = vrot.slane %v42, %v274
    %v276 = vlaneseq
    %v277 = vshrl.u32 %v276, 7
    %v278 = vsub.s32 4, %v277
    %v279 = vrot.slane %v43, %v278
    %v280 = vlaneseq
    %v281 = vshrl.u32 %v280, 7
    %v282 = vsub.s32 4, %v281
    %v283 = vrot.slane %v44, %v282
    %v284 = vlaneseq
    %v285 = vshrl.u32 %v284, 7
    %v286 = vsub.s32 4, %v285
    %v287 = vrot.slane %v45, %v286
    %v288 = vmul.f32 %v118, %v275
    %v289 = vmul.f32 %v119, %v279
    %v290 = vmul.f32 %v120, %v283
    %v291 = vmul.f32 %v121, %v287
    %292 = vst [vmem:[#allocation2 + $0x80] sm:$0xff] %v288
    %293 = vst [vmem:[#allocation2 + $0x88] sm:$0xff] %v289
    %294 = vst [vmem:[#allocation2 + $0x90] sm:$0xff] %v290
    %295 = vst [vmem:[#allocation2 + $0x98] sm:$0xff] %v291
    %296 = vrot.lane.b32.xlu0 %v118, 127
    %v297 = vpop.permute.xlu0 %296
    %298 = vrot.lane.b32.xlu0 %v119, 127
    %v299 = vpop.permute.xlu0 %298
    %300 = vrot.lane.b32.xlu0 %v120, 127
    %v301 = vpop.permute.xlu0 %300
    %302 = vrot.lane.b32.xlu0 %v121, 127
    %v303 = vpop.permute.xlu0 %302
    %vm304 = vcmp.lt.s32.totalorder %v131, 127
    %v305 = vsel %vm304, %v301, %v303
    %v306 = vsel %vm304, %v299, %v301
    %v307 = vsel %vm304, %v297, %v299
    %v308 = vsel %vm304, %v303, %v297
    %v309 = vlaneseq
    %v310 = vshrl.u32 %v309, 7
    %v311 = vsub.s32 5, %v310
    %v312 = vrot.slane %v42, %v311
    %v313 = vlaneseq
    %v314 = vshrl.u32 %v313, 7
    %v315 = vsub.s32 5, %v314
    %v316 = vrot.slane %v43, %v315
    %v317 = vlaneseq
    %v318 = vshrl.u32 %v317, 7
    %v319 = vsub.s32 5, %v318
    %v320 = vrot.slane %v44, %v319
    %v321 = vlaneseq
    %v322 = vshrl.u32 %v321, 7
    %v323 = vsub.s32 5, %v322
    %v324 = vrot.slane %v45, %v323
    %v325 = vmul.f32 %v307, %v312
    %v326 = vmul.f32 %v306, %v316
    %v327 = vmul.f32 %v305, %v320
    %v328 = vmul.f32 %v308, %v324
    %329 = vst [vmem:[#allocation2 + $0xa0] sm:$0xff] %v325
    %330 = vst [vmem:[#allocation2 + $0xa8] sm:$0xff] %v326
    %331 = vst [vmem:[#allocation2 + $0xb0] sm:$0xff] %v327
    %332 = vst [vmem:[#allocation2 + $0xb8] sm:$0xff] %v328
    %333 = vrot.lane.b32.xlu0 %v118, 113
    %v334 = vpop.permute.xlu0 %333
    %335 = vrot.lane.b32.xlu0 %v119, 113
    %v336 = vpop.permute.xlu0 %335
    %337 = vrot.lane.b32.xlu0 %v120, 113
    %v338 = vpop.permute.xlu0 %337
    %339 = vrot.lane.b32.xlu0 %v121, 113
    %v340 = vpop.permute.xlu0 %339
    %vm341 = vcmp.lt.s32.totalorder %v131, 113
    %v342 = vsel %vm341, %v338, %v340
    %v343 = vsel %vm341, %v336, %v338
    %v344 = vsel %vm341, %v334, %v336
    %v345 = vsel %vm341, %v340, %v334
    %v346 = vlaneseq
    %v347 = vshrl.u32 %v346, 7
    %v348 = vsub.s32 6, %v347
    %v349 = vrot.slane %v42, %v348
    %v350 = vlaneseq
    %v351 = vshrl.u32 %v350, 7
    %v352 = vsub.s32 6, %v351
    %v353 = vrot.slane %v43, %v352
    %v354 = vlaneseq
    %v355 = vshrl.u32 %v354, 7
    %v356 = vsub.s32 6, %v355
    %v357 = vrot.slane %v44, %v356
    %v358 = vlaneseq
    %v359 = vshrl.u32 %v358, 7
    %v360 = vsub.s32 6, %v359
    %v361 = vrot.slane %v45, %v360
    %v362 = vmul.f32 %v344, %v349
    %v363 = vmul.f32 %v343, %v353
    %v364 = vmul.f32 %v342, %v357
    %v365 = vmul.f32 %v345, %v361
    %366 = vst [vmem:[#allocation2 + $0xc0] sm:$0xff] %v362
    %367 = vst [vmem:[#allocation2 + $0xc8] sm:$0xff] %v363
    %368 = vst [vmem:[#allocation2 + $0xd0] sm:$0xff] %v364
    %369 = vst [vmem:[#allocation2 + $0xd8] sm:$0xff] %v365
    %370 = vrot.lane.b32.xlu0 %v118, 112
    %v371 = vpop.permute.xlu0 %370
    %372 = vrot.lane.b32.xlu0 %v119, 112
    %v373 = vpop.permute.xlu0 %372
    %374 = vrot.lane.b32.xlu0 %v120, 112
    %v375 = vpop.permute.xlu0 %374
    %376 = vrot.lane.b32.xlu0 %v121, 112
    %v377 = vpop.permute.xlu0 %376
    %vm378 = vcmp.lt.s32.totalorder %v131, 112
    %v379 = vsel %vm378, %v375, %v377
    %v380 = vsel %vm378, %v373, %v375
    %v381 = vsel %vm378, %v371, %v373
    %v382 = vsel %vm378, %v377, %v371
    %v383 = vlaneseq
    %v384 = vshrl.u32 %v383, 7
    %v385 = vsub.s32 7, %v384
    %v386 = vrot.slane %v42, %v385
    %v387 = vlaneseq
    %v388 = vshrl.u32 %v387, 7
    %v389 = vsub.s32 7, %v388
    %v390 = vrot.slane %v43, %v389
    %v391 = vlaneseq
    %v392 = vshrl.u32 %v391, 7
    %v393 = vsub.s32 7, %v392
    %v394 = vrot.slane %v44, %v393
    %v395 = vlaneseq
    %v396 = vshrl.u32 %v395, 7
    %v397 = vsub.s32 7, %v396
    %v398 = vrot.slane %v45, %v397
    %v399 = vmul.f32 %v381, %v386
    %v400 = vmul.f32 %v380, %v390
    %v401 = vmul.f32 %v379, %v394
    %v402 = vmul.f32 %v382, %v398
    %403 = vst [vmem:[#allocation2 + $0xe0] sm:$0xff] %v399
    %404 = vst [vmem:[#allocation2 + $0xe8] sm:$0xff] %v400
    %405 = vst [vmem:[#allocation2 + $0xf0] sm:$0xff] %v401
    %406 = vst [vmem:[#allocation2 + $0xf8] sm:$0xff] %v402
    %407 = vrot.lane.b32.xlu0 %v118, 111
    %v408 = vpop.permute.xlu0 %407
    %409 = vrot.lane.b32.xlu0 %v119, 111
    %v410 = vpop.permute.xlu0 %409
    %411 = vrot.lane.b32.xlu0 %v120, 111
    %v412 = vpop.permute.xlu0 %411
    %413 = vrot.lane.b32.xlu0 %v121, 111
    %v414 = vpop.permute.xlu0 %413
    %vm415 = vcmp.lt.s32.totalorder %v131, 111
    %v416 = vsel %vm415, %v412, %v414
    %v417 = vsel %vm415, %v410, %v412
    %v418 = vsel %vm415, %v408, %v410
    %v419 = vsel %vm415, %v414, %v408
    %v420 = vlaneseq
    %v421 = vshrl.u32 %v420, 7
    %v422 = vsub.s32 0, %v421
    %v423 = vrot.slane %v46, %v422
    %v424 = vlaneseq
    %v425 = vshrl.u32 %v424, 7
    %v426 = vsub.s32 0, %v425
    %v427 = vrot.slane %v47, %v426
    %v428 = vlaneseq
    %v429 = vshrl.u32 %v428, 7
    %v430 = vsub.s32 0, %v429
    %v431 = vrot.slane %v48, %v430
    %v432 = vlaneseq
    %v433 = vshrl.u32 %v432, 7
    %v434 = vsub.s32 0, %v433
    %v435 = vrot.slane %v49, %v434
    %v436 = vmul.f32 %v418, %v423
    %v437 = vmul.f32 %v417, %v427
    %v438 = vmul.f32 %v416, %v431
    %v439 = vmul.f32 %v419, %v435
    %440 = vst [vmem:[#allocation2 + $0x100] sm:$0xff] %v436
    %441 = vst [vmem:[#allocation2 + $0x108] sm:$0xff] %v437
    %442 = vst [vmem:[#allocation2 + $0x110] sm:$0xff] %v438
    %443 = vst [vmem:[#allocation2 + $0x118] sm:$0xff] %v439
    %v444 = vld [vmem:[#allocation2] sm:$0xff]
    %v445 = vld [vmem:[#allocation2 + $0x8] sm:$0xff]
    %v446 = vld [vmem:[#allocation2 + $0x10] sm:$0xff]
    %v447 = vld [vmem:[#allocation2 + $0x18] sm:$0xff]
    %v448 = vld [vmem:[#allocation2 + $0x20] sm:$0xff]
    %v449 = vld [vmem:[#allocation2 + $0x28] sm:$0xff]
    %v450 = vld [vmem:[#allocation2 + $0x30] sm:$0xff]
    %v451 = vld [vmem:[#allocation2 + $0x38] sm:$0xff]
    %v452 = vld [vmem:[#allocation2 + $0x40] sm:$0xff]
    %v453 = vld [vmem:[#allocation2 + $0x48] sm:$0xff]
    %v454 = vld [vmem:[#allocation2 + $0x50] sm:$0xff]
    %v455 = vld [vmem:[#allocation2 + $0x58] sm:$0xff]
    %v456 = vld [vmem:[#allocation2 + $0x60] sm:$0xff]
    %v457 = vld [vmem:[#allocation2 + $0x68] sm:$0xff]
    %v458 = vld [vmem:[#allocation2 + $0x70] sm:$0xff]
    %v459 = vld [vmem:[#allocation2 + $0x78] sm:$0xff]
    %v460 = vld [vmem:[#allocation2 + $0x80] sm:$0xff]
    %v461 = vld [vmem:[#allocation2 + $0x88] sm:$0xff]
    %v462 = vld [vmem:[#allocation2 + $0x90] sm:$0xff]
    %v463 = vld [vmem:[#allocation2 + $0x98] sm:$0xff]
    %v464 = vld [vmem:[#allocation2 + $0xa0] sm:$0xff]
    %v465 = vld [vmem:[#allocation2 + $0xa8] sm:$0xff]
    %v466 = vld [vmem:[#allocation2 + $0xb0] sm:$0xff]
    %v467 = vld [vmem:[#allocation2 + $0xb8] sm:$0xff]
    %v468 = vld [vmem:[#allocation2 + $0xc0] sm:$0xff]
    %v469 = vld [vmem:[#allocation2 + $0xc8] sm:$0xff]
    %v470 = vld [vmem:[#allocation2 + $0xd0] sm:$0xff]
    %v471 = vld [vmem:[#allocation2 + $0xd8] sm:$0xff]
    %v472 = vld [vmem:[#allocation2 + $0xe0] sm:$0xff]
    %v473 = vld [vmem:[#allocation2 + $0xe8] sm:$0xff]
    %v474 = vld [vmem:[#allocation2 + $0xf0] sm:$0xff]
    %v475 = vld [vmem:[#allocation2 + $0xf8] sm:$0xff]
    %v476 = vld [vmem:[#allocation2 + $0x100] sm:$0xff]
    %v477 = vld [vmem:[#allocation2 + $0x108] sm:$0xff]
    %v478 = vld [vmem:[#allocation2 + $0x110] sm:$0xff]
    %v479 = vld [vmem:[#allocation2 + $0x118] sm:$0xff]
    %v480 = vld [vmem:[%s5] sm:$0xff]
    %v481 = vld [vmem:[%s5 + $0x8] sm:$0xff]
    %vm482 = vcmask 588800
    %v484 = vsel %vm482, %v480, 0
    %v487 = vsel %vm482, %v481, 0
    %489 = vmatprep.subr.mxu0 0.0
    %490 = vmatpush1.msra.mxu0 0.0
    %491 = vmatprep.subr.mxu0 0.0
    %492 = vmatpush1.msra.mxu0 0.0
    %493 = vmatprep.subr.mxu0 0.0
    %494 = vmatpush1.msra.mxu0 0.0
    %495 = vmatprep.subr.mxu0 0.0
    %496 = vmatpush1.msra.mxu0 0.0
    %497 = vmatprep.subr.mxu0 0.0
    %498 = vmatpush1.msra.mxu0 0.0
    %499 = vmatprep.subr.mxu0 0.0
    %500 = vmatpush1.msra.mxu0 0.0
    %501 = vmatprep.subr.mxu0 0.0
    %502 = vmatpush1.msra.mxu0 0.0
    %503 = vmatprep.subr.mxu0 %v477
    %504 = vmatpush1.msra.mxu0 %v476
    %505 = vmatprep.subr.mxu0 %v473
    %506 = vmatpush1.msra.mxu0 %v472
    %507 = vmatprep.subr.mxu0 %v469
    %508 = vmatpush1.msra.mxu0 %v468
    %509 = vmatprep.subr.mxu0 %v465
    %510 = vmatpush1.msra.mxu0 %v464
    %511 = vmatprep.subr.mxu0 %v461
    %512 = vmatpush1.msra.mxu0 %v460
    %513 = vmatprep.subr.mxu0 %v457
    %514 = vmatpush1.msra.mxu0 %v456
    %515 = vmatprep.subr.mxu0 %v453
    %516 = vmatpush1.msra.mxu0 %v452
    %517 = vmatprep.subr.mxu0 %v449
    %518 = vmatpush1.msra.mxu0 %v448
    %519 = vmatprep.subr.mxu0 %v445
    %520 = vmatpush1.msra.mxu0 %v444
    %521 = vmatprep.subr.mxu0 0.0
    %522 = vmatpush2.msra.mxu0 0.0
    %523 = vmatprep.subr.mxu0 0.0
    %524 = vmatpush2.msra.mxu0 0.0
    %525 = vmatprep.subr.mxu0 0.0
    %526 = vmatpush2.msra.mxu0 0.0
    %527 = vmatprep.subr.mxu0 0.0
    %528 = vmatpush2.msra.mxu0 0.0
    %529 = vmatprep.subr.mxu0 0.0
    %530 = vmatpush2.msra.mxu0 0.0
    %531 = vmatprep.subr.mxu0 0.0
    %532 = vmatpush2.msra.mxu0 0.0
    %533 = vmatprep.subr.mxu0 0.0
    %534 = vmatpush2.msra.mxu0 0.0
    %535 = vmatprep.subr.mxu0 0.0
    %536 = vmatpush2.msra.mxu0 0.0
    %537 = vmatprep.subr.mxu0 0.0
    %538 = vmatpush2.msra.mxu0 0.0
    %539 = vmatprep.subr.mxu0 0.0
    %540 = vmatpush2.msra.mxu0 0.0
    %541 = vmatprep.subr.mxu0 0.0
    %542 = vmatpush2.msra.mxu0 0.0
    %543 = vmatprep.subr.mxu0 0.0
    %544 = vmatpush2.msra.mxu0 0.0
    %545 = vmatprep.subr.mxu0 0.0
    %546 = vmatpush2.msra.mxu0 0.0
    %547 = vmatprep.subr.mxu0 0.0
    %548 = vmatpush2.msra.mxu0 0.0
    %549 = vmatprep.subr.mxu0 0.0
    %550 = vmatpush2.msra.mxu0 0.0
    %551 = vmatprep.subr.mxu0 0.0
    %552 = vmatpush2.msra.mxu0 0.0
    %553 = vmatprep.mubr.f32.mxu0 0.0
    %554 = vmatmul.mubr.f32.gmra.mxu0 %v484
    %v555 = vpop.f32.mrf.mxu0
    %v556 = vadd.f32 0.0, %v555
    %v557 = vpop.f32.mrf.mxu0
    %v558 = vadd.f32 0.0, %v557
    %559 = vmatprep.mubr.f32.mxu0 0.0
    %560 = vmatmul.mubr.f32.gmra.mxu0 %v487
    %v561 = vpop.f32.mrf.mxu0
    %v562 = vadd.f32 0.0, %v561
    %v563 = vpop.f32.mrf.mxu0
    %v564 = vadd.f32 0.0, %v563
    %565 = vdwg.mxu0
    %566 = vmatprep.subr.mxu0 0.0
    %567 = vmatpush1.msra.mxu0 0.0
    %568 = vmatprep.subr.mxu0 0.0
    %569 = vmatpush1.msra.mxu0 0.0
    %570 = vmatprep.subr.mxu0 0.0
    %571 = vmatpush1.msra.mxu0 0.0
    %572 = vmatprep.subr.mxu0 0.0
    %573 = vmatpush1.msra.mxu0 0.0
    %574 = vmatprep.subr.mxu0 0.0
    %575 = vmatpush1.msra.mxu0 0.0
    %576 = vmatprep.subr.mxu0 0.0
    %577 = vmatpush1.msra.mxu0 0.0
    %578 = vmatprep.subr.mxu0 0.0
    %579 = vmatpush1.msra.mxu0 0.0
    %580 = vmatprep.subr.mxu0 %v479
    %581 = vmatpush1.msra.mxu0 %v478
    %582 = vmatprep.subr.mxu0 %v475
    %583 = vmatpush1.msra.mxu0 %v474
    %584 = vmatprep.subr.mxu0 %v471
    %585 = vmatpush1.msra.mxu0 %v470
    %586 = vmatprep.subr.mxu0 %v467
    %587 = vmatpush1.msra.mxu0 %v466
    %588 = vmatprep.subr.mxu0 %v463
    %589 = vmatpush1.msra.mxu0 %v462
    %590 = vmatprep.subr.mxu0 %v459
    %591 = vmatpush1.msra.mxu0 %v458
    %592 = vmatprep.subr.mxu0 %v455
    %593 = vmatpush1.msra.mxu0 %v454
    %594 = vmatprep.subr.mxu0 %v451
    %595 = vmatpush1.msra.mxu0 %v450
    %596 = vmatprep.subr.mxu0 %v447
    %597 = vmatpush1.msra.mxu0 %v446
    %598 = vmatprep.subr.mxu0 0.0
    %599 = vmatpush2.msra.mxu0 0.0
    %600 = vmatprep.subr.mxu0 0.0
    %601 = vmatpush2.msra.mxu0 0.0
    %602 = vmatprep.subr.mxu0 0.0
    %603 = vmatpush2.msra.mxu0 0.0
    %604 = vmatprep.subr.mxu0 0.0
    %605 = vmatpush2.msra.mxu0 0.0
    %606 = vmatprep.subr.mxu0 0.0
    %607 = vmatpush2.msra.mxu0 0.0
    %608 = vmatprep.subr.mxu0 0.0
    %609 = vmatpush2.msra.mxu0 0.0
    %610 = vmatprep.subr.mxu0 0.0
    %611 = vmatpush2.msra.mxu0 0.0
    %612 = vmatprep.subr.mxu0 0.0
    %613 = vmatpush2.msra.mxu0 0.0
    %614 = vmatprep.subr.mxu0 0.0
    %615 = vmatpush2.msra.mxu0 0.0
    %616 = vmatprep.subr.mxu0 0.0
    %617 = vmatpush2.msra.mxu0 0.0
    %618 = vmatprep.subr.mxu0 0.0
    %619 = vmatpush2.msra.mxu0 0.0
    %620 = vmatprep.subr.mxu0 0.0
    %621 = vmatpush2.msra.mxu0 0.0
    %622 = vmatprep.subr.mxu0 0.0
    %623 = vmatpush2.msra.mxu0 0.0
    %624 = vmatprep.subr.mxu0 0.0
    %625 = vmatpush2.msra.mxu0 0.0
    %626 = vmatprep.subr.mxu0 0.0
    %627 = vmatpush2.msra.mxu0 0.0
    %628 = vmatprep.subr.mxu0 0.0
    %629 = vmatpush2.msra.mxu0 0.0
    %630 = vmatprep.mubr.f32.mxu0 0.0
    %631 = vmatmul.mubr.f32.gmra.mxu0 %v484
    %v632 = vpop.f32.mrf.mxu0
    %v633 = vadd.f32 0.0, %v632
    %v634 = vpop.f32.mrf.mxu0
    %v635 = vadd.f32 0.0, %v634
    %636 = vmatprep.mubr.f32.mxu0 0.0
    %637 = vmatmul.mubr.f32.gmra.mxu0 %v487
    %v638 = vpop.f32.mrf.mxu0
    %v639 = vadd.f32 0.0, %v638
    %v640 = vpop.f32.mrf.mxu0
    %v641 = vadd.f32 0.0, %v640
    %642 = vdwg.mxu0
    %s643 = sld [smem:[#allocation3]]
    %644 = vmatprep.subr.mxu0 0.0
    %645 = vmatpush1.msra.mxu0 %v65
    %646 = vmatprep.subr.mxu0 0.0
    %647 = vmatpush1.msra.mxu0 %v64
    %648 = vmatprep.subr.mxu0 0.0
    %649 = vmatpush1.msra.mxu0 %v63
    %650 = vmatprep.subr.mxu0 0.0
    %651 = vmatpush1.msra.mxu0 %v62
    %652 = vmatprep.subr.mxu0 0.0
    %653 = vmatpush1.msra.mxu0 %v61
    %654 = vmatprep.subr.mxu0 0.0
    %655 = vmatpush1.msra.mxu0 %v60
    %656 = vmatprep.subr.mxu0 0.0
    %657 = vmatpush1.msra.mxu0 %v59
    %658 = vmatprep.subr.mxu0 0.0
    %659 = vmatpush1.msra.mxu0 %v58
    %660 = vmatprep.subr.mxu0 0.0
    %661 = vmatpush1.msra.mxu0 %v57
    %662 = vmatprep.subr.mxu0 0.0
    %663 = vmatpush1.msra.mxu0 %v56
    %664 = vmatprep.subr.mxu0 0.0
    %665 = vmatpush1.msra.mxu0 %v55
    %666 = vmatprep.subr.mxu0 0.0
    %667 = vmatpush1.msra.mxu0 %v54
    %668 = vmatprep.subr.mxu0 0.0
    %669 = vmatpush1.msra.mxu0 %v53
    %670 = vmatprep.subr.mxu0 0.0
    %671 = vmatpush1.msra.mxu0 %v52
    %672 = vmatprep.subr.mxu0 0.0
    %673 = vmatpush1.msra.mxu0 %v51
    %674 = vmatprep.subr.mxu0 0.0
    %675 = vmatpush1.msra.mxu0 %v50
    %676 = vmatprep.subr.mxu0 0.0
    %677 = vmatpush2.msra.mxu0 %v81
    %678 = vmatprep.subr.mxu0 0.0
    %679 = vmatpush2.msra.mxu0 %v80
    %680 = vmatprep.subr.mxu0 0.0
    %681 = vmatpush2.msra.mxu0 %v79
    %682 = vmatprep.subr.mxu0 0.0
    %683 = vmatpush2.msra.mxu0 %v78
    %684 = vmatprep.subr.mxu0 0.0
    %685 = vmatpush2.msra.mxu0 %v77
    %686 = vmatprep.subr.mxu0 0.0
    %687 = vmatpush2.msra.mxu0 %v76
    %688 = vmatprep.subr.mxu0 0.0
    %689 = vmatpush2.msra.mxu0 %v75
    %690 = vmatprep.subr.mxu0 0.0
    %691 = vmatpush2.msra.mxu0 %v74
    %692 = vmatprep.subr.mxu0 0.0
    %693 = vmatpush2.msra.mxu0 %v73
    %694 = vmatprep.subr.mxu0 0.0
    %695 = vmatpush2.msra.mxu0 %v72
    %696 = vmatprep.subr.mxu0 0.0
    %697 = vmatpush2.msra.mxu0 %v71
    %698 = vmatprep.subr.mxu0 0.0
    %699 = vmatpush2.msra.mxu0 %v70
    %700 = vmatprep.subr.mxu0 0.0
    %701 = vmatpush2.msra.mxu0 %v69
    %702 = vmatprep.subr.mxu0 0.0
    %703 = vmatpush2.msra.mxu0 %v68
    %704 = vmatprep.subr.mxu0 0.0
    %705 = vmatpush2.msra.mxu0 %v67
    %706 = vmatprep.subr.mxu0 0.0
    %707 = vmatpush2.msra.mxu0 %v66
    %708 = vmatprep.mubr.f32.mxu0 %v558
    %709 = vmatmul.mubr.f32.gmra.mxu0 %v556
    %v710 = vpop.f32.mrf.mxu0
    %v711 = vadd.f32 0.0, %v710
    %v712 = vpop.f32.mrf.mxu0
    %713 = vdwg.mxu0
    %714 = vmatprep.subr.mxu0 0.0
    %715 = vmatpush1.msra.mxu0 %v97
    %716 = vmatprep.subr.mxu0 0.0
    %717 = vmatpush1.msra.mxu0 %v96
    %718 = vmatprep.subr.mxu0 0.0
    %719 = vmatpush1.msra.mxu0 %v95
    %720 = vmatprep.subr.mxu0 0.0
    %721 = vmatpush1.msra.mxu0 %v94
    %722 = vmatprep.subr.mxu0 0.0
    %723 = vmatpush1.msra.mxu0 %v93
    %724 = vmatprep.subr.mxu0 0.0
    %725 = vmatpush1.msra.mxu0 %v92
    %726 = vmatprep.subr.mxu0 0.0
    %727 = vmatpush1.msra.mxu0 %v91
    %728 = vmatprep.subr.mxu0 0.0
    %729 = vmatpush1.msra.mxu0 %v90
    %730 = vmatprep.subr.mxu0 0.0
    %731 = vmatpush1.msra.mxu0 %v89
    %732 = vmatprep.subr.mxu0 0.0
    %733 = vmatpush1.msra.mxu0 %v88
    %734 = vmatprep.subr.mxu0 0.0
    %735 = vmatpush1.msra.mxu0 %v87
    %736 = vmatprep.subr.mxu0 0.0
    %737 = vmatpush1.msra.mxu0 %v86
    %738 = vmatprep.subr.mxu0 0.0
    %739 = vmatpush1.msra.mxu0 %v85
    %740 = vmatprep.subr.mxu0 0.0
    %741 = vmatpush1.msra.mxu0 %v84
    %742 = vmatprep.subr.mxu0 0.0
    %743 = vmatpush1.msra.mxu0 %v83
    %744 = vmatprep.subr.mxu0 0.0
    %745 = vmatpush1.msra.mxu0 %v82
    %746 = vmatprep.subr.mxu0 0.0
    %747 = vmatpush2.msra.mxu0 %v113
    %748 = vmatprep.subr.mxu0 0.0
    %749 = vmatpush2.msra.mxu0 %v112
    %750 = vmatprep.subr.mxu0 0.0
    %751 = vmatpush2.msra.mxu0 %v111
    %752 = vmatprep.subr.mxu0 0.0
    %753 = vmatpush2.msra.mxu0 %v110
    %754 = vmatprep.subr.mxu0 0.0
    %755 = vmatpush2.msra.mxu0 %v109
    %756 = vmatprep.subr.mxu0 0.0
    %757 = vmatpush2.msra.mxu0 %v108
    %758 = vmatprep.subr.mxu0 0.0
    %759 = vmatpush2.msra.mxu0 %v107
    %760 = vmatprep.subr.mxu0 0.0
    %761 = vmatpush2.msra.mxu0 %v106
    %762 = vmatprep.subr.mxu0 0.0
    %763 = vmatpush2.msra.mxu0 %v105
    %764 = vmatprep.subr.mxu0 0.0
    %765 = vmatpush2.msra.mxu0 %v104
    %766 = vmatprep.subr.mxu0 0.0
    %767 = vmatpush2.msra.mxu0 %v103
    %768 = vmatprep.subr.mxu0 0.0
    %769 = vmatpush2.msra.mxu0 %v102
    %770 = vmatprep.subr.mxu0 0.0
    %771 = vmatpush2.msra.mxu0 %v101
    %772 = vmatprep.subr.mxu0 0.0
    %773 = vmatpush2.msra.mxu0 %v100
    %774 = vmatprep.subr.mxu0 0.0
    %775 = vmatpush2.msra.mxu0 %v99
    %776 = vmatprep.subr.mxu0 0.0
    %777 = vmatpush2.msra.mxu0 %v98
    %778 = vmatprep.mubr.f32.mxu0 %v635
    %779 = vmatmul.mubr.f32.gmra.mxu0 %v633
    %v780 = vpop.f32.mrf.mxu0
    %v781 = vadd.f32 %v711, %v780
    %v782 = vpop.f32.mrf.mxu0
    %783 = vdwg.mxu0
    %v784 = vmul.f32 %v781, 0.00390625
    %vm785 = vcmask 64512
    %v787 = vsel %vm785, %v784, 0
    %789 = vmatprep.subr.mxu0 0.0
    %790 = vmatpush1.msra.mxu0 0.0
    %791 = vmatprep.subr.mxu0 0.0
    %792 = vmatpush1.msra.mxu0 0.0
    %793 = vmatprep.subr.mxu0 0.0
    %794 = vmatpush1.msra.mxu0 0.0
    %795 = vmatprep.subr.mxu0 0.0
    %796 = vmatpush1.msra.mxu0 0.0
    %797 = vmatprep.subr.mxu0 0.0
    %798 = vmatpush1.msra.mxu0 0.0
    %799 = vmatprep.subr.mxu0 0.0
    %800 = vmatpush1.msra.mxu0 0.0
    %801 = vmatprep.subr.mxu0 0.0
    %802 = vmatpush1.msra.mxu0 0.0
    %803 = vmatprep.subr.mxu0 0.0
    %804 = vmatpush1.msra.mxu0 0.0
    %805 = vmatprep.subr.mxu0 0.0
    %806 = vmatpush1.msra.mxu0 0.0
    %807 = vmatprep.subr.mxu0 0.0
    %808 = vmatpush1.msra.mxu0 0.0
    %809 = vmatprep.subr.mxu0 0.0
    %810 = vmatpush1.msra.mxu0 0.0
    %811 = vmatprep.subr.mxu0 0.0
    %812 = vmatpush1.msra.mxu0 0.0
    %813 = vmatprep.subr.mxu0 0.0
    %814 = vmatpush1.msra.mxu0 0.0
    %815 = vmatprep.subr.mxu0 0.0
    %816 = vmatpush1.msra.mxu0 0.0
    %817 = vmatprep.subr.mxu0 0.0
    %818 = vmatpush1.msra.mxu0 0.0
    %819 = vmatprep.subr.mxu0 %v115
    %820 = vmatpush1.msra.mxu0 %v114
    %821 = vmatprep.subr.mxu0 0.0
    %822 = vmatpush2.msra.mxu0 0.0
    %823 = vmatprep.subr.mxu0 0.0
    %824 = vmatpush2.msra.mxu0 0.0
    %825 = vmatprep.subr.mxu0 0.0
    %826 = vmatpush2.msra.mxu0 0.0
    %827 = vmatprep.subr.mxu0 0.0
    %828 = vmatpush2.msra.mxu0 0.0
    %829 = vmatprep.subr.mxu0 0.0
    %830 = vmatpush2.msra.mxu0 0.0
    %831 = vmatprep.subr.mxu0 0.0
    %832 = vmatpush2.msra.mxu0 0.0
    %833 = vmatprep.subr.mxu0 0.0
    %834 = vmatpush2.msra.mxu0 0.0
    %835 = vmatprep.subr.mxu0 0.0
    %836 = vmatpush2.msra.mxu0 0.0
    %837 = vmatprep.subr.mxu0 0.0
    %838 = vmatpush2.msra.mxu0 0.0
    %839 = vmatprep.subr.mxu0 0.0
    %840 = vmatpush2.msra.mxu0 0.0
    %841 = vmatprep.subr.mxu0 0.0
    %842 = vmatpush2.msra.mxu0 0.0
    %843 = vmatprep.subr.mxu0 0.0
    %844 = vmatpush2.msra.mxu0 0.0
    %845 = vmatprep.subr.mxu0 0.0
    %846 = vmatpush2.msra.mxu0 0.0
    %847 = vmatprep.subr.mxu0 0.0
    %848 = vmatpush2.msra.mxu0 0.0
    %849 = vmatprep.subr.mxu0 0.0
    %850 = vmatpush2.msra.mxu0 0.0
    %851 = vmatprep.subr.mxu0 0.0
    %852 = vmatpush2.msra.mxu0 0.0
    %853 = vmatprep.mubr.f32.mxu0 0.0
    %854 = vmatmul.mubr.f32.gmra.mxu0 %v787
    %v855 = vpop.f32.mrf.mxu0
    %v856 = vadd.f32 0.0, %v855
    %v857 = vpop.f32.mrf.mxu0
    %v858 = vadd.f32 0.0, %v857
    %859 = vdwg.mxu0
    %860 = vmatprep.subr.mxu0 0.0
    %861 = vmatpush1.msra.mxu0 0.0
    %862 = vmatprep.subr.mxu0 0.0
    %863 = vmatpush1.msra.mxu0 0.0
    %864 = vmatprep.subr.mxu0 0.0
    %865 = vmatpush1.msra.mxu0 0.0
    %866 = vmatprep.subr.mxu0 0.0
    %867 = vmatpush1.msra.mxu0 0.0
    %868 = vmatprep.subr.mxu0 0.0
    %869 = vmatpush1.msra.mxu0 0.0
    %870 = vmatprep.subr.mxu0 0.0
    %871 = vmatpush1.msra.mxu0 0.0
    %872 = vmatprep.subr.mxu0 0.0
    %873 = vmatpush1.msra.mxu0 0.0
    %874 = vmatprep.subr.mxu0 0.0
    %875 = vmatpush1.msra.mxu0 0.0
    %876 = vmatprep.subr.mxu0 0.0
    %877 = vmatpush1.msra.mxu0 0.0
    %878 = vmatprep.subr.mxu0 0.0
    %879 = vmatpush1.msra.mxu0 0.0
    %880 = vmatprep.subr.mxu0 0.0
    %881 = vmatpush1.msra.mxu0 0.0
    %882 = vmatprep.subr.mxu0 0.0
    %883 = vmatpush1.msra.mxu0 0.0
    %884 = vmatprep.subr.mxu0 0.0
    %885 = vmatpush1.msra.mxu0 0.0
    %886 = vmatprep.subr.mxu0 0.0
    %887 = vmatpush1.msra.mxu0 0.0
    %888 = vmatprep.subr.mxu0 0.0
    %889 = vmatpush1.msra.mxu0 0.0
    %890 = vmatprep.subr.mxu0 %v117
    %891 = vmatpush1.msra.mxu0 %v116
    %892 = vmatprep.subr.mxu0 0.0
    %893 = vmatpush2.msra.mxu0 0.0
    %894 = vmatprep.subr.mxu0 0.0
    %895 = vmatpush2.msra.mxu0 0.0
    %896 = vmatprep.subr.mxu0 0.0
    %897 = vmatpush2.msra.mxu0 0.0
    %898 = vmatprep.subr.mxu0 0.0
    %899 = vmatpush2.msra.mxu0 0.0
    %900 = vmatprep.subr.mxu0 0.0
    %901 = vmatpush2.msra.mxu0 0.0
    %902 = vmatprep.subr.mxu0 0.0
    %903 = vmatpush2.msra.mxu0 0.0
    %904 = vmatprep.subr.mxu0 0.0
    %905 = vmatpush2.msra.mxu0 0.0
    %906 = vmatprep.subr.mxu0 0.0
    %907 = vmatpush2.msra.mxu0 0.0
    %908 = vmatprep.subr.mxu0 0.0
    %909 = vmatpush2.msra.mxu0 0.0
    %910 = vmatprep.subr.mxu0 0.0
    %911 = vmatpush2.msra.mxu0 0.0
    %912 = vmatprep.subr.mxu0 0.0
    %913 = vmatpush2.msra.mxu0 0.0
    %914 = vmatprep.subr.mxu0 0.0
    %915 = vmatpush2.msra.mxu0 0.0
    %916 = vmatprep.subr.mxu0 0.0
    %917 = vmatpush2.msra.mxu0 0.0
    %918 = vmatprep.subr.mxu0 0.0
    %919 = vmatpush2.msra.mxu0 0.0
    %920 = vmatprep.subr.mxu0 0.0
    %921 = vmatpush2.msra.mxu0 0.0
    %922 = vmatprep.subr.mxu0 0.0
    %923 = vmatpush2.msra.mxu0 0.0
    %924 = vmatprep.mubr.f32.mxu0 0.0
    %925 = vmatmul.mubr.f32.gmra.mxu0 %v787
    %v926 = vpop.f32.mrf.mxu0
    %v927 = vadd.f32 0.0, %v926
    %v928 = vpop.f32.mrf.mxu0
    %v929 = vadd.f32 0.0, %v928
    %930 = vdwg.mxu0
    %v931 = vsub.f32 %v556, %v856
    %v932 = vsub.f32 %v558, %v858
    %v933 = vsub.f32 %v633, %v927
    %v934 = vsub.f32 %v635, %v929
    %v935 = vmul.f32 %v931, %v931
    %v936 = vmul.f32 %v932, %v932
    %v937 = vmul.f32 %v933, %v933
    %v938 = vmul.f32 %v934, %v934
    %939 = vmatprep.subr.mxu0 0.0
    %940 = vmatpush1.msra.mxu0 %v65
    %941 = vmatprep.subr.mxu0 0.0
    %942 = vmatpush1.msra.mxu0 %v64
    %943 = vmatprep.subr.mxu0 0.0
    %944 = vmatpush1.msra.mxu0 %v63
    %945 = vmatprep.subr.mxu0 0.0
    %946 = vmatpush1.msra.mxu0 %v62
    %947 = vmatprep.subr.mxu0 0.0
    %948 = vmatpush1.msra.mxu0 %v61
    %949 = vmatprep.subr.mxu0 0.0
    %950 = vmatpush1.msra.mxu0 %v60
    %951 = vmatprep.subr.mxu0 0.0
    %952 = vmatpush1.msra.mxu0 %v59
    %953 = vmatprep.subr.mxu0 0.0
    %954 = vmatpush1.msra.mxu0 %v58
    %955 = vmatprep.subr.mxu0 0.0
    %956 = vmatpush1.msra.mxu0 %v57
    %957 = vmatprep.subr.mxu0 0.0
    %958 = vmatpush1.msra.mxu0 %v56
    %959 = vmatprep.subr.mxu0 0.0
    %960 = vmatpush1.msra.mxu0 %v55
    %961 = vmatprep.subr.mxu0 0.0
    %962 = vmatpush1.msra.mxu0 %v54
    %963 = vmatprep.subr.mxu0 0.0
    %964 = vmatpush1.msra.mxu0 %v53
    %965 = vmatprep.subr.mxu0 0.0
    %966 = vmatpush1.msra.mxu0 %v52
    %967 = vmatprep.subr.mxu0 0.0
    %968 = vmatpush1.msra.mxu0 %v51
    %969 = vmatprep.subr.mxu0 0.0
    %970 = vmatpush1.msra.mxu0 %v50
    %971 = vmatprep.subr.mxu0 0.0
    %972 = vmatpush2.msra.mxu0 %v81
    %973 = vmatprep.subr.mxu0 0.0
    %974 = vmatpush2.msra.mxu0 %v80
    %975 = vmatprep.subr.mxu0 0.0
    %976 = vmatpush2.msra.mxu0 %v79
    %977 = vmatprep.subr.mxu0 0.0
    %978 = vmatpush2.msra.mxu0 %v78
    %979 = vmatprep.subr.mxu0 0.0
    %980 = vmatpush2.msra.mxu0 %v77
    %981 = vmatprep.subr.mxu0 0.0
    %982 = vmatpush2.msra.mxu0 %v76
    %983 = vmatprep.subr.mxu0 0.0
    %984 = vmatpush2.msra.mxu0 %v75
    %985 = vmatprep.subr.mxu0 0.0
    %986 = vmatpush2.msra.mxu0 %v74
    %987 = vmatprep.subr.mxu0 0.0
    %988 = vmatpush2.msra.mxu0 %v73
    %989 = vmatprep.subr.mxu0 0.0
    %990 = vmatpush2.msra.mxu0 %v72
    %991 = vmatprep.subr.mxu0 0.0
    %992 = vmatpush2.msra.mxu0 %v71
    %993 = vmatprep.subr.mxu0 0.0
    %994 = vmatpush2.msra.mxu0 %v70
    %995 = vmatprep.subr.mxu0 0.0
    %996 = vmatpush2.msra.mxu0 %v69
    %997 = vmatprep.subr.mxu0 0.0
    %998 = vmatpush2.msra.mxu0 %v68
    %999 = vmatprep.subr.mxu0 0.0
    %1000 = vmatpush2.msra.mxu0 %v67
    %1001 = vmatprep.subr.mxu0 0.0
    %1002 = vmatpush2.msra.mxu0 %v66
    %1003 = vmatprep.mubr.f32.mxu0 %v936
    %1004 = vmatmul.mubr.f32.gmra.mxu0 %v935
    %v1005 = vpop.f32.mrf.mxu0
    %v1006 = vadd.f32 0.0, %v1005
    %v1007 = vpop.f32.mrf.mxu0
    %1008 = vdwg.mxu0
    %1009 = vmatprep.subr.mxu0 0.0
    %1010 = vmatpush1.msra.mxu0 %v97
    %1011 = vmatprep.subr.mxu0 0.0
    %1012 = vmatpush1.msra.mxu0 %v96
    %1013 = vmatprep.subr.mxu0 0.0
    %1014 = vmatpush1.msra.mxu0 %v95
    %1015 = vmatprep.subr.mxu0 0.0
    %1016 = vmatpush1.msra.mxu0 %v94
    %1017 = vmatprep.subr.mxu0 0.0
    %1018 = vmatpush1.msra.mxu0 %v93
    %1019 = vmatprep.subr.mxu0 0.0
    %1020 = vmatpush1.msra.mxu0 %v92
    %1021 = vmatprep.subr.mxu0 0.0
    %1022 = vmatpush1.msra.mxu0 %v91
    %1023 = vmatprep.subr.mxu0 0.0
    %1024 = vmatpush1.msra.mxu0 %v90
    %1025 = vmatprep.subr.mxu0 0.0
    %1026 = vmatpush1.msra.mxu0 %v89
    %1027 = vmatprep.subr.mxu0 0.0
    %1028 = vmatpush1.msra.mxu0 %v88
    %1029 = vmatprep.subr.mxu0 0.0
    %1030 = vmatpush1.msra.mxu0 %v87
    %1031 = vmatprep.subr.mxu0 0.0
    %1032 = vmatpush1.msra.mxu0 %v86
    %1033 = vmatprep.subr.mxu0 0.0
    %1034 = vmatpush1.msra.mxu0 %v85
    %1035 = vmatprep.subr.mxu0 0.0
    %1036 = vmatpush1.msra.mxu0 %v84
    %1037 = vmatprep.subr.mxu0 0.0
    %1038 = vmatpush1.msra.mxu0 %v83
    %1039 = vmatprep.subr.mxu0 0.0
    %1040 = vmatpush1.msra.mxu0 %v82
    %1041 = vmatprep.subr.mxu0 0.0
    %1042 = vmatpush2.msra.mxu0 %v113
    %1043 = vmatprep.subr.mxu0 0.0
    %1044 = vmatpush2.msra.mxu0 %v112
    %1045 = vmatprep.subr.mxu0 0.0
    %1046 = vmatpush2.msra.mxu0 %v111
    %1047 = vmatprep.subr.mxu0 0.0
    %1048 = vmatpush2.msra.mxu0 %v110
    %1049 = vmatprep.subr.mxu0 0.0
    %1050 = vmatpush2.msra.mxu0 %v109
    %1051 = vmatprep.subr.mxu0 0.0
    %1052 = vmatpush2.msra.mxu0 %v108
    %1053 = vmatprep.subr.mxu0 0.0
    %1054 = vmatpush2.msra.mxu0 %v107
    %1055 = vmatprep.subr.mxu0 0.0
    %1056 = vmatpush2.msra.mxu0 %v106
    %1057 = vmatprep.subr.mxu0 0.0
    %1058 = vmatpush2.msra.mxu0 %v105
    %1059 = vmatprep.subr.mxu0 0.0
    %1060 = vmatpush2.msra.mxu0 %v104
    %1061 = vmatprep.subr.mxu0 0.0
    %1062 = vmatpush2.msra.mxu0 %v103
    %1063 = vmatprep.subr.mxu0 0.0
    %1064 = vmatpush2.msra.mxu0 %v102
    %1065 = vmatprep.subr.mxu0 0.0
    %1066 = vmatpush2.msra.mxu0 %v101
    %1067 = vmatprep.subr.mxu0 0.0
    %1068 = vmatpush2.msra.mxu0 %v100
    %1069 = vmatprep.subr.mxu0 0.0
    %1070 = vmatpush2.msra.mxu0 %v99
    %1071 = vmatprep.subr.mxu0 0.0
    %1072 = vmatpush2.msra.mxu0 %v98
    %1073 = vmatprep.mubr.f32.mxu0 %v938
    %1074 = vmatmul.mubr.f32.gmra.mxu0 %v937
    %v1075 = vpop.f32.mrf.mxu0
    %v1076 = vadd.f32 %v1006, %v1075
    %v1077 = vpop.f32.mrf.mxu0
    %1078 = vdwg.mxu0
    %v1079 = vmul.f32 %v1076, 0.00390625
    %v1080 = vadd.f32 %v1079, 1e-05
    %v1081 = vrsqrt.pop %v1080
    %v1083 = vsel %vm785, %v1081, 0
    %1085 = vmatprep.subr.mxu0 0.0
    %1086 = vmatpush1.msra.mxu0 0.0
    %1087 = vmatprep.subr.mxu0 0.0
    %1088 = vmatpush1.msra.mxu0 0.0
    %1089 = vmatprep.subr.mxu0 0.0
    %1090 = vmatpush1.msra.mxu0 0.0
    %1091 = vmatprep.subr.mxu0 0.0
    %1092 = vmatpush1.msra.mxu0 0.0
    %1093 = vmatprep.subr.mxu0 0.0
    %1094 = vmatpush1.msra.mxu0 0.0
    %1095 = vmatprep.subr.mxu0 0.0
    %1096 = vmatpush1.msra.mxu0 0.0
    %1097 = vmatprep.subr.mxu0 0.0
    %1098 = vmatpush1.msra.mxu0 0.0
    %1099 = vmatprep.subr.mxu0 0.0
    %1100 = vmatpush1.msra.mxu0 0.0
    %1101 = vmatprep.subr.mxu0 0.0
    %1102 = vmatpush1.msra.mxu0 0.0
    %1103 = vmatprep.subr.mxu0 0.0
    %1104 = vmatpush1.msra.mxu0 0.0
    %1105 = vmatprep.subr.mxu0 0.0
    %1106 = vmatpush1.msra.mxu0 0.0
    %1107 = vmatprep.subr.mxu0 0.0
    %1108 = vmatpush1.msra.mxu0 0.0
    %1109 = vmatprep.subr.mxu0 0.0
    %1110 = vmatpush1.msra.mxu0 0.0
    %1111 = vmatprep.subr.mxu0 0.0
    %1112 = vmatpush1.msra.mxu0 0.0
    %1113 = vmatprep.subr.mxu0 0.0
    %1114 = vmatpush1.msra.mxu0 0.0
    %1115 = vmatprep.subr.mxu0 %v115
    %1116 = vmatpush1.msra.mxu0 %v114
    %1117 = vmatprep.subr.mxu0 0.0
    %1118 = vmatpush2.msra.mxu0 0.0
    %1119 = vmatprep.subr.mxu0 0.0
    %1120 = vmatpush2.msra.mxu0 0.0
    %1121 = vmatprep.subr.mxu0 0.0
    %1122 = vmatpush2.msra.mxu0 0.0
    %1123 = vmatprep.subr.mxu0 0.0
    %1124 = vmatpush2.msra.mxu0 0.0
    %1125 = vmatprep.subr.mxu0 0.0
    %1126 = vmatpush2.msra.mxu0 0.0
    %1127 = vmatprep.subr.mxu0 0.0
    %1128 = vmatpush2.msra.mxu0 0.0
    %1129 = vmatprep.subr.mxu0 0.0
    %1130 = vmatpush2.msra.mxu0 0.0
    %1131 = vmatprep.subr.mxu0 0.0
    %1132 = vmatpush2.msra.mxu0 0.0
    %1133 = vmatprep.subr.mxu0 0.0
    %1134 = vmatpush2.msra.mxu0 0.0
    %1135 = vmatprep.subr.mxu0 0.0
    %1136 = vmatpush2.msra.mxu0 0.0
    %1137 = vmatprep.subr.mxu0 0.0
    %1138 = vmatpush2.msra.mxu0 0.0
    %1139 = vmatprep.subr.mxu0 0.0
    %1140 = vmatpush2.msra.mxu0 0.0
    %1141 = vmatprep.subr.mxu0 0.0
    %1142 = vmatpush2.msra.mxu0 0.0
    %1143 = vmatprep.subr.mxu0 0.0
    %1144 = vmatpush2.msra.mxu0 0.0
    %1145 = vmatprep.subr.mxu0 0.0
    %1146 = vmatpush2.msra.mxu0 0.0
    %1147 = vmatprep.subr.mxu0 0.0
    %1148 = vmatpush2.msra.mxu0 0.0
    %1149 = vmatprep.mubr.f32.mxu0 0.0
    %1150 = vmatmul.mubr.f32.gmra.mxu0 %v1083
    %v1151 = vpop.f32.mrf.mxu0
    %v1152 = vadd.f32 0.0, %v1151
    %v1153 = vpop.f32.mrf.mxu0
    %v1154 = vadd.f32 0.0, %v1153
    %1155 = vdwg.mxu0
    %1156 = vmatprep.subr.mxu0 0.0
    %1157 = vmatpush1.msra.mxu0 0.0
    %1158 = vmatprep.subr.mxu0 0.0
    %1159 = vmatpush1.msra.mxu0 0.0
    %1160 = vmatprep.subr.mxu0 0.0
    %1161 = vmatpush1.msra.mxu0 0.0
    %1162 = vmatprep.subr.mxu0 0.0
    %1163 = vmatpush1.msra.mxu0 0.0
    %1164 = vmatprep.subr.mxu0 0.0
    %1165 = vmatpush1.msra.mxu0 0.0
    %1166 = vmatprep.subr.mxu0 0.0
    %1167 = vmatpush1.msra.mxu0 0.0
    %1168 = vmatprep.subr.mxu0 0.0
    %1169 = vmatpush1.msra.mxu0 0.0
    %1170 = vmatprep.subr.mxu0 0.0
    %1171 = vmatpush1.msra.mxu0 0.0
    %1172 = vmatprep.subr.mxu0 0.0
    %1173 = vmatpush1.msra.mxu0 0.0
    %1174 = vmatprep.subr.mxu0 0.0
    %1175 = vmatpush1.msra.mxu0 0.0
    %1176 = vmatprep.subr.mxu0 0.0
    %1177 = vmatpush1.msra.mxu0 0.0
    %1178 = vmatprep.subr.mxu0 0.0
    %1179 = vmatpush1.msra.mxu0 0.0
    %1180 = vmatprep.subr.mxu0 0.0
    %1181 = vmatpush1.msra.mxu0 0.0
    %1182 = vmatprep.subr.mxu0 0.0
    %1183 = vmatpush1.msra.mxu0 0.0
    %1184 = vmatprep.subr.mxu0 0.0
    %1185 = vmatpush1.msra.mxu0 0.0
    %1186 = vmatprep.subr.mxu0 %v117
    %1187 = vmatpush1.msra.mxu0 %v116
    %1188 = vmatprep.subr.mxu0 0.0
    %1189 = vmatpush2.msra.mxu0 0.0
    %1190 = vmatprep.subr.mxu0 0.0
    %1191 = vmatpush2.msra.mxu0 0.0
    %1192 = vmatprep.subr.mxu0 0.0
    %1193 = vmatpush2.msra.mxu0 0.0
    %1194 = vmatprep.subr.mxu0 0.0
    %1195 = vmatpush2.msra.mxu0 0.0
    %1196 = vmatprep.subr.mxu0 0.0
    %1197 = vmatpush2.msra.mxu0 0.0
    %1198 = vmatprep.subr.mxu0 0.0
    %1199 = vmatpush2.msra.mxu0 0.0
    %1200 = vmatprep.subr.mxu0 0.0
    %1201 = vmatpush2.msra.mxu0 0.0
    %1202 = vmatprep.subr.mxu0 0.0
    %1203 = vmatpush2.msra.mxu0 0.0
    %1204 = vmatprep.subr.mxu0 0.0
    %1205 = vmatpush2.msra.mxu0 0.0
    %1206 = vmatprep.subr.mxu0 0.0
    %1207 = vmatpush2.msra.mxu0 0.0
    %1208 = vmatprep.subr.mxu0 0.0
    %1209 = vmatpush2.msra.mxu0 0.0
    %1210 = vmatprep.subr.mxu0 0.0
    %1211 = vmatpush2.msra.mxu0 0.0
    %1212 = vmatprep.subr.mxu0 0.0
    %1213 = vmatpush2.msra.mxu0 0.0
    %1214 = vmatprep.subr.mxu0 0.0
    %1215 = vmatpush2.msra.mxu0 0.0
    %1216 = vmatprep.subr.mxu0 0.0
    %1217 = vmatpush2.msra.mxu0 0.0
    %1218 = vmatprep.subr.mxu0 0.0
    %1219 = vmatpush2.msra.mxu0 0.0
    %1220 = vmatprep.mubr.f32.mxu0 0.0
    %1221 = vmatmul.mubr.f32.gmra.mxu0 %v1083
    %v1222 = vpop.f32.mrf.mxu0
    %v1223 = vadd.f32 0.0, %v1222
    %v1224 = vpop.f32.mrf.mxu0
    %v1225 = vadd.f32 0.0, %v1224
    %1226 = vdwg.mxu0
    %v1227 = vmul.f32 %v931, %v1152
    %v1228 = vmul.f32 %v932, %v1154
    %v1229 = vmul.f32 %v933, %v1223
    %v1230 = vmul.f32 %v934, %v1225
    %vm1231 = vcmp.ge.f32.partialorder %v1227, 0.0
    %vm1232 = vcmp.ge.f32.partialorder %v1228, 0.0
    %vm1233 = vcmp.ge.f32.partialorder %v1229, 0.0
    %vm1234 = vcmp.ge.f32.partialorder %v1230, 0.0
    %v1235 = vstv %s643
    %v1236 = vmul.f32 %v1235, %v1227
    %v1237 = vmul.f32 %v1235, %v1228
    %v1238 = vmul.f32 %v1235, %v1229
    %v1239 = vmul.f32 %v1235, %v1230
    %v1240 = vsel %vm1231, %v1227, %v1236
    %v1241 = vsel %vm1232, %v1228, %v1237
    %v1242 = vsel %vm1233, %v1229, %v1238
    %v1243 = vsel %vm1234, %v1230, %v1239
    %v1244 = vld [vmem:[%s7] sm:$0xff]
    %1246 = vset.pattern.permute.xlu0 0
    %1247 = vperm.xlu0 %1246, %v1244
    %v1248 = vpop.permute.xlu0 %1247
    %v1250 = vadd.f32 %v562, %v1248
    %v1251 = vadd.f32 %v564, %v1248
    %v1252 = vadd.f32 %v639, %v1248
    %v1253 = vadd.f32 %v641, %v1248
    %1254 = vrot.lane.b32.xlu0 %v1240, 17
    %v1255 = vpop.permute.xlu0 %1254
    %1256 = vrot.lane.b32.xlu0 %v1241, 17
    %v1257 = vpop.permute.xlu0 %1256
    %1258 = vrot.lane.b32.xlu0 %v1242, 17
    %v1259 = vpop.permute.xlu0 %1258
    %1260 = vrot.lane.b32.xlu0 %v1243, 17
    %v1261 = vpop.permute.xlu0 %1260
    %v1262 = vsel %vm132, %v1259, %v1261
    %v1263 = vsel %vm132, %v1257, %v1259
    %v1264 = vsel %vm132, %v1255, %v1257
    %v1265 = vsel %vm132, %v1261, %v1255
    %v1266 = vmul.f32 %v1265, %v140
    %v1267 = vmul.f32 %v1264, %v144
    %v1268 = vmul.f32 %v1263, %v148
    %v1269 = vmul.f32 %v1262, %v152
    %1270 = vst [vmem:[#allocation2] sm:$0xff] %v1266
    %1271 = vst [vmem:[#allocation2 + $0x8] sm:$0xff] %v1267
    %1272 = vst [vmem:[#allocation2 + $0x10] sm:$0xff] %v1268
    %1273 = vst [vmem:[#allocation2 + $0x18] sm:$0xff] %v1269
    %1274 = vrot.lane.b32.xlu0 %v1240, 16
    %v1275 = vpop.permute.xlu0 %1274
    %1276 = vrot.lane.b32.xlu0 %v1241, 16
    %v1277 = vpop.permute.xlu0 %1276
    %1278 = vrot.lane.b32.xlu0 %v1242, 16
    %v1279 = vpop.permute.xlu0 %1278
    %1280 = vrot.lane.b32.xlu0 %v1243, 16
    %v1281 = vpop.permute.xlu0 %1280
    %v1282 = vsel %vm169, %v1279, %v1281
    %v1283 = vsel %vm169, %v1277, %v1279
    %v1284 = vsel %vm169, %v1275, %v1277
    %v1285 = vsel %vm169, %v1281, %v1275
    %v1286 = vmul.f32 %v1285, %v177
    %v1287 = vmul.f32 %v1284, %v181
    %v1288 = vmul.f32 %v1283, %v185
    %v1289 = vmul.f32 %v1282, %v189
    %1290 = vst [vmem:[#allocation2 + $0x20] sm:$0xff] %v1286
    %1291 = vst [vmem:[#allocation2 + $0x28] sm:$0xff] %v1287
    %1292 = vst [vmem:[#allocation2 + $0x30] sm:$0xff] %v1288
    %1293 = vst [vmem:[#allocation2 + $0x38] sm:$0xff] %v1289
    %1294 = vrot.lane.b32.xlu0 %v1240, 15
    %v1295 = vpop.permute.xlu0 %1294
    %1296 = vrot.lane.b32.xlu0 %v1241, 15
    %v1297 = vpop.permute.xlu0 %1296
    %1298 = vrot.lane.b32.xlu0 %v1242, 15
    %v1299 = vpop.permute.xlu0 %1298
    %1300 = vrot.lane.b32.xlu0 %v1243, 15
    %v1301 = vpop.permute.xlu0 %1300
    %v1302 = vsel %vm206, %v1299, %v1301
    %v1303 = vsel %vm206, %v1297, %v1299
    %v1304 = vsel %vm206, %v1295, %v1297
    %v1305 = vsel %vm206, %v1301, %v1295
    %v1306 = vmul.f32 %v1305, %v214
    %v1307 = vmul.f32 %v1304, %v218
    %v1308 = vmul.f32 %v1303, %v222
    %v1309 = vmul.f32 %v1302, %v226
    %1310 = vst [vmem:[#allocation2 + $0x40] sm:$0xff] %v1306
    %1311 = vst [vmem:[#allocation2 + $0x48] sm:$0xff] %v1307
    %1312 = vst [vmem:[#allocation2 + $0x50] sm:$0xff] %v1308
    %1313 = vst [vmem:[#allocation2 + $0x58] sm:$0xff] %v1309
    %1314 = vrot.lane.b32.xlu0 %v1240, 1
    %v1315 = vpop.permute.xlu0 %1314
    %1316 = vrot.lane.b32.xlu0 %v1241, 1
    %v1317 = vpop.permute.xlu0 %1316
    %1318 = vrot.lane.b32.xlu0 %v1242, 1
    %v1319 = vpop.permute.xlu0 %1318
    %1320 = vrot.lane.b32.xlu0 %v1243, 1
    %v1321 = vpop.permute.xlu0 %1320
    %v1322 = vsel %vm243, %v1319, %v1321
    %v1323 = vsel %vm243, %v1317, %v1319
    %v1324 = vsel %vm243, %v1315, %v1317
    %v1325 = vsel %vm243, %v1321, %v1315
    %v1326 = vmul.f32 %v1325, %v251
    %v1327 = vmul.f32 %v1324, %v255
    %v1328 = vmul.f32 %v1323, %v259
    %v1329 = vmul.f32 %v1322, %v263
    %1330 = vst [vmem:[#allocation2 + $0x60] sm:$0xff] %v1326
    %1331 = vst [vmem:[#allocation2 + $0x68] sm:$0xff] %v1327
    %1332 = vst [vmem:[#allocation2 + $0x70] sm:$0xff] %v1328
    %1333 = vst [vmem:[#allocation2 + $0x78] sm:$0xff] %v1329
    %v1334 = vmul.f32 %v1240, %v275
    %v1335 = vmul.f32 %v1241, %v279
    %v1336 = vmul.f32 %v1242, %v283
    %v1337 = vmul.f32 %v1243, %v287
    %1338 = vst [vmem:[#allocation2 + $0x80] sm:$0xff] %v1334
    %1339 = vst [vmem:[#allocation2 + $0x88] sm:$0xff] %v1335
    %1340 = vst [vmem:[#allocation2 + $0x90] sm:$0xff] %v1336
    %1341 = vst [vmem:[#allocation2 + $0x98] sm:$0xff] %v1337
    %1342 = vrot.lane.b32.xlu0 %v1240, 127
    %v1343 = vpop.permute.xlu0 %1342
    %1344 = vrot.lane.b32.xlu0 %v1241, 127
    %v1345 = vpop.permute.xlu0 %1344
    %1346 = vrot.lane.b32.xlu0 %v1242, 127
    %v1347 = vpop.permute.xlu0 %1346
    %1348 = vrot.lane.b32.xlu0 %v1243, 127
    %v1349 = vpop.permute.xlu0 %1348
    %v1350 = vsel %vm304, %v1347, %v1349
    %v1351 = vsel %vm304, %v1345, %v1347
    %v1352 = vsel %vm304, %v1343, %v1345
    %v1353 = vsel %vm304, %v1349, %v1343
    %v1354 = vmul.f32 %v1352, %v312
    %v1355 = vmul.f32 %v1351, %v316
    %v1356 = vmul.f32 %v1350, %v320
    %v1357 = vmul.f32 %v1353, %v324
    %1358 = vst [vmem:[#allocation2 + $0xa0] sm:$0xff] %v1354
    %1359 = vst [vmem:[#allocation2 + $0xa8] sm:$0xff] %v1355
    %1360 = vst [vmem:[#allocation2 + $0xb0] sm:$0xff] %v1356
    %1361 = vst [vmem:[#allocation2 + $0xb8] sm:$0xff] %v1357
    %1362 = vrot.lane.b32.xlu0 %v1240, 113
    %v1363 = vpop.permute.xlu0 %1362
    %1364 = vrot.lane.b32.xlu0 %v1241, 113
    %v1365 = vpop.permute.xlu0 %1364
    %1366 = vrot.lane.b32.xlu0 %v1242, 113
    %v1367 = vpop.permute.xlu0 %1366
    %1368 = vrot.lane.b32.xlu0 %v1243, 113
    %v1369 = vpop.permute.xlu0 %1368
    %v1370 = vsel %vm341, %v1367, %v1369
    %v1371 = vsel %vm341, %v1365, %v1367
    %v1372 = vsel %vm341, %v1363, %v1365
    %v1373 = vsel %vm341, %v1369, %v1363
    %v1374 = vmul.f32 %v1372, %v349
    %v1375 = vmul.f32 %v1371, %v353
    %v1376 = vmul.f32 %v1370, %v357
    %v1377 = vmul.f32 %v1373, %v361
    %1378 = vst [vmem:[#allocation2 + $0xc0] sm:$0xff] %v1374
    %1379 = vst [vmem:[#allocation2 + $0xc8] sm:$0xff] %v1375
    %1380 = vst [vmem:[#allocation2 + $0xd0] sm:$0xff] %v1376
    %1381 = vst [vmem:[#allocation2 + $0xd8] sm:$0xff] %v1377
    %1382 = vrot.lane.b32.xlu0 %v1240, 112
    %v1383 = vpop.permute.xlu0 %1382
    %1384 = vrot.lane.b32.xlu0 %v1241, 112
    %v1385 = vpop.permute.xlu0 %1384
    %1386 = vrot.lane.b32.xlu0 %v1242, 112
    %v1387 = vpop.permute.xlu0 %1386
    %1388 = vrot.lane.b32.xlu0 %v1243, 112
    %v1389 = vpop.permute.xlu0 %1388
    %v1390 = vsel %vm378, %v1387, %v1389
    %v1391 = vsel %vm378, %v1385, %v1387
    %v1392 = vsel %vm378, %v1383, %v1385
    %v1393 = vsel %vm378, %v1389, %v1383
    %v1394 = vmul.f32 %v1392, %v386
    %v1395 = vmul.f32 %v1391, %v390
    %v1396 = vmul.f32 %v1390, %v394
    %v1397 = vmul.f32 %v1393, %v398
    %1398 = vst [vmem:[#allocation2 + $0xe0] sm:$0xff] %v1394
    %1399 = vst [vmem:[#allocation2 + $0xe8] sm:$0xff] %v1395
    %1400 = vst [vmem:[#allocation2 + $0xf0] sm:$0xff] %v1396
    %1401 = vst [vmem:[#allocation2 + $0xf8] sm:$0xff] %v1397
    %1402 = vrot.lane.b32.xlu0 %v1240, 111
    %v1403 = vpop.permute.xlu0 %1402
    %1404 = vrot.lane.b32.xlu0 %v1241, 111
    %v1405 = vpop.permute.xlu0 %1404
    %1406 = vrot.lane.b32.xlu0 %v1242, 111
    %v1407 = vpop.permute.xlu0 %1406
    %1408 = vrot.lane.b32.xlu0 %v1243, 111
    %v1409 = vpop.permute.xlu0 %1408
    %v1410 = vsel %vm415, %v1407, %v1409
    %v1411 = vsel %vm415, %v1405, %v1407
    %v1412 = vsel %vm415, %v1403, %v1405
    %v1413 = vsel %vm415, %v1409, %v1403
    %v1414 = vmul.f32 %v1412, %v423
    %v1415 = vmul.f32 %v1411, %v427
    %v1416 = vmul.f32 %v1410, %v431
    %v1417 = vmul.f32 %v1413, %v435
    %1418 = vst [vmem:[#allocation2 + $0x100] sm:$0xff] %v1414
    %1419 = vst [vmem:[#allocation2 + $0x108] sm:$0xff] %v1415
    %1420 = vst [vmem:[#allocation2 + $0x110] sm:$0xff] %v1416
    %1421 = vst [vmem:[#allocation2 + $0x118] sm:$0xff] %v1417
    %v1422 = vld [vmem:[#allocation2] sm:$0xff]
    %v1423 = vld [vmem:[#allocation2 + $0x8] sm:$0xff]
    %v1424 = vld [vmem:[#allocation2 + $0x10] sm:$0xff]
    %v1425 = vld [vmem:[#allocation2 + $0x18] sm:$0xff]
    %v1426 = vld [vmem:[#allocation2 + $0x20] sm:$0xff]
    %v1427 = vld [vmem:[#allocation2 + $0x28] sm:$0xff]
    %v1428 = vld [vmem:[#allocation2 + $0x30] sm:$0xff]
    %v1429 = vld [vmem:[#allocation2 + $0x38] sm:$0xff]
    %v1430 = vld [vmem:[#allocation2 + $0x40] sm:$0xff]
    %v1431 = vld [vmem:[#allocation2 + $0x48] sm:$0xff]
    %v1432 = vld [vmem:[#allocation2 + $0x50] sm:$0xff]
    %v1433 = vld [vmem:[#allocation2 + $0x58] sm:$0xff]
    %v1434 = vld [vmem:[#allocation2 + $0x60] sm:$0xff]
    %v1435 = vld [vmem:[#allocation2 + $0x68] sm:$0xff]
    %v1436 = vld [vmem:[#allocation2 + $0x70] sm:$0xff]
    %v1437 = vld [vmem:[#allocation2 + $0x78] sm:$0xff]
    %v1438 = vld [vmem:[#allocation2 + $0x80] sm:$0xff]
    %v1439 = vld [vmem:[#allocation2 + $0x88] sm:$0xff]
    %v1440 = vld [vmem:[#allocation2 + $0x90] sm:$0xff]
    %v1441 = vld [vmem:[#allocation2 + $0x98] sm:$0xff]
    %v1442 = vld [vmem:[#allocation2 + $0xa0] sm:$0xff]
    %v1443 = vld [vmem:[#allocation2 + $0xa8] sm:$0xff]
    %v1444 = vld [vmem:[#allocation2 + $0xb0] sm:$0xff]
    %v1445 = vld [vmem:[#allocation2 + $0xb8] sm:$0xff]
    %v1446 = vld [vmem:[#allocation2 + $0xc0] sm:$0xff]
    %v1447 = vld [vmem:[#allocation2 + $0xc8] sm:$0xff]
    %v1448 = vld [vmem:[#allocation2 + $0xd0] sm:$0xff]
    %v1449 = vld [vmem:[#allocation2 + $0xd8] sm:$0xff]
    %v1450 = vld [vmem:[#allocation2 + $0xe0] sm:$0xff]
    %v1451 = vld [vmem:[#allocation2 + $0xe8] sm:$0xff]
    %v1452 = vld [vmem:[#allocation2 + $0xf0] sm:$0xff]
    %v1453 = vld [vmem:[#allocation2 + $0xf8] sm:$0xff]
    %v1454 = vld [vmem:[#allocation2 + $0x100] sm:$0xff]
    %v1455 = vld [vmem:[#allocation2 + $0x108] sm:$0xff]
    %v1456 = vld [vmem:[#allocation2 + $0x110] sm:$0xff]
    %v1457 = vld [vmem:[#allocation2 + $0x118] sm:$0xff]
    %v1458 = vld [vmem:[%s6] sm:$0xff]
    %v1460 = vsel %vm482, %v1458, 0
    %1462 = vmatprep.subr.mxu0 0.0
    %1463 = vmatpush1.msra.mxu0 0.0
    %1464 = vmatprep.subr.mxu0 0.0
    %1465 = vmatpush1.msra.mxu0 0.0
    %1466 = vmatprep.subr.mxu0 0.0
    %1467 = vmatpush1.msra.mxu0 0.0
    %1468 = vmatprep.subr.mxu0 0.0
    %1469 = vmatpush1.msra.mxu0 0.0
    %1470 = vmatprep.subr.mxu0 0.0
    %1471 = vmatpush1.msra.mxu0 0.0
    %1472 = vmatprep.subr.mxu0 0.0
    %1473 = vmatpush1.msra.mxu0 0.0
    %1474 = vmatprep.subr.mxu0 0.0
    %1475 = vmatpush1.msra.mxu0 0.0
    %1476 = vmatprep.subr.mxu0 %v1455
    %1477 = vmatpush1.msra.mxu0 %v1454
    %1478 = vmatprep.subr.mxu0 %v1451
    %1479 = vmatpush1.msra.mxu0 %v1450
    %1480 = vmatprep.subr.mxu0 %v1447
    %1481 = vmatpush1.msra.mxu0 %v1446
    %1482 = vmatprep.subr.mxu0 %v1443
    %1483 = vmatpush1.msra.mxu0 %v1442
    %1484 = vmatprep.subr.mxu0 %v1439
    %1485 = vmatpush1.msra.mxu0 %v1438
    %1486 = vmatprep.subr.mxu0 %v1435
    %1487 = vmatpush1.msra.mxu0 %v1434
    %1488 = vmatprep.subr.mxu0 %v1431
    %1489 = vmatpush1.msra.mxu0 %v1430
    %1490 = vmatprep.subr.mxu0 %v1427
    %1491 = vmatpush1.msra.mxu0 %v1426
    %1492 = vmatprep.subr.mxu0 %v1423
    %1493 = vmatpush1.msra.mxu0 %v1422
    %1494 = vmatprep.subr.mxu0 0.0
    %1495 = vmatpush2.msra.mxu0 0.0
    %1496 = vmatprep.subr.mxu0 0.0
    %1497 = vmatpush2.msra.mxu0 0.0
    %1498 = vmatprep.subr.mxu0 0.0
    %1499 = vmatpush2.msra.mxu0 0.0
    %1500 = vmatprep.subr.mxu0 0.0
    %1501 = vmatpush2.msra.mxu0 0.0
    %1502 = vmatprep.subr.mxu0 0.0
    %1503 = vmatpush2.msra.mxu0 0.0
    %1504 = vmatprep.subr.mxu0 0.0
    %1505 = vmatpush2.msra.mxu0 0.0
    %1506 = vmatprep.subr.mxu0 0.0
    %1507 = vmatpush2.msra.mxu0 0.0
    %1508 = vmatprep.subr.mxu0 0.0
    %1509 = vmatpush2.msra.mxu0 0.0
    %1510 = vmatprep.subr.mxu0 0.0
    %1511 = vmatpush2.msra.mxu0 0.0
    %1512 = vmatprep.subr.mxu0 0.0
    %1513 = vmatpush2.msra.mxu0 0.0
    %1514 = vmatprep.subr.mxu0 0.0
    %1515 = vmatpush2.msra.mxu0 0.0
    %1516 = vmatprep.subr.mxu0 0.0
    %1517 = vmatpush2.msra.mxu0 0.0
    %1518 = vmatprep.subr.mxu0 0.0
    %1519 = vmatpush2.msra.mxu0 0.0
    %1520 = vmatprep.subr.mxu0 0.0
    %1521 = vmatpush2.msra.mxu0 0.0
    %1522 = vmatprep.subr.mxu0 0.0
    %1523 = vmatpush2.msra.mxu0 0.0
    %1524 = vmatprep.subr.mxu0 0.0
    %1525 = vmatpush2.msra.mxu0 0.0
    %1526 = vmatprep.mubr.f32.mxu0 0.0
    %1527 = vmatmul.mubr.f32.gmra.mxu0 %v1460
    %v1528 = vpop.f32.mrf.mxu0
    %v1529 = vadd.f32 0.0, %v1528
    %v1530 = vpop.f32.mrf.mxu0
    %v1531 = vadd.f32 0.0, %v1530
    %1532 = vdwg.mxu0
    %1533 = vmatprep.subr.mxu0 0.0
    %1534 = vmatpush1.msra.mxu0 0.0
    %1535 = vmatprep.subr.mxu0 0.0
    %1536 = vmatpush1.msra.mxu0 0.0
    %1537 = vmatprep.subr.mxu0 0.0
    %1538 = vmatpush1.msra.mxu0 0.0
    %1539 = vmatprep.subr.mxu0 0.0
    %1540 = vmatpush1.msra.mxu0 0.0
    %1541 = vmatprep.subr.mxu0 0.0
    %1542 = vmatpush1.msra.mxu0 0.0
    %1543 = vmatprep.subr.mxu0 0.0
    %1544 = vmatpush1.msra.mxu0 0.0
    %1545 = vmatprep.subr.mxu0 0.0
    %1546 = vmatpush1.msra.mxu0 0.0
    %1547 = vmatprep.subr.mxu0 %v1457
    %1548 = vmatpush1.msra.mxu0 %v1456
    %1549 = vmatprep.subr.mxu0 %v1453
    %1550 = vmatpush1.msra.mxu0 %v1452
    %1551 = vmatprep.subr.mxu0 %v1449
    %1552 = vmatpush1.msra.mxu0 %v1448
    %1553 = vmatprep.subr.mxu0 %v1445
    %1554 = vmatpush1.msra.mxu0 %v1444
    %1555 = vmatprep.subr.mxu0 %v1441
    %1556 = vmatpush1.msra.mxu0 %v1440
    %1557 = vmatprep.subr.mxu0 %v1437
    %1558 = vmatpush1.msra.mxu0 %v1436
    %1559 = vmatprep.subr.mxu0 %v1433
    %1560 = vmatpush1.msra.mxu0 %v1432
    %1561 = vmatprep.subr.mxu0 %v1429
    %1562 = vmatpush1.msra.mxu0 %v1428
    %1563 = vmatprep.subr.mxu0 %v1425
    %1564 = vmatpush1.msra.mxu0 %v1424
    %1565 = vmatprep.subr.mxu0 0.0
    %1566 = vmatpush2.msra.mxu0 0.0
    %1567 = vmatprep.subr.mxu0 0.0
    %1568 = vmatpush2.msra.mxu0 0.0
    %1569 = vmatprep.subr.mxu0 0.0
    %1570 = vmatpush2.msra.mxu0 0.0
    %1571 = vmatprep.subr.mxu0 0.0
    %1572 = vmatpush2.msra.mxu0 0.0
    %1573 = vmatprep.subr.mxu0 0.0
    %1574 = vmatpush2.msra.mxu0 0.0
    %1575 = vmatprep.subr.mxu0 0.0
    %1576 = vmatpush2.msra.mxu0 0.0
    %1577 = vmatprep.subr.mxu0 0.0
    %1578 = vmatpush2.msra.mxu0 0.0
    %1579 = vmatprep.subr.mxu0 0.0
    %1580 = vmatpush2.msra.mxu0 0.0
    %1581 = vmatprep.subr.mxu0 0.0
    %1582 = vmatpush2.msra.mxu0 0.0
    %1583 = vmatprep.subr.mxu0 0.0
    %1584 = vmatpush2.msra.mxu0 0.0
    %1585 = vmatprep.subr.mxu0 0.0
    %1586 = vmatpush2.msra.mxu0 0.0
    %1587 = vmatprep.subr.mxu0 0.0
    %1588 = vmatpush2.msra.mxu0 0.0
    %1589 = vmatprep.subr.mxu0 0.0
    %1590 = vmatpush2.msra.mxu0 0.0
    %1591 = vmatprep.subr.mxu0 0.0
    %1592 = vmatpush2.msra.mxu0 0.0
    %1593 = vmatprep.subr.mxu0 0.0
    %1594 = vmatpush2.msra.mxu0 0.0
    %1595 = vmatprep.subr.mxu0 0.0
    %1596 = vmatpush2.msra.mxu0 0.0
    %1597 = vmatprep.mubr.f32.mxu0 0.0
    %1598 = vmatmul.mubr.f32.gmra.mxu0 %v1460
    %v1599 = vpop.f32.mrf.mxu0
    %v1600 = vadd.f32 0.0, %v1599
    %v1601 = vpop.f32.mrf.mxu0
    %v1602 = vadd.f32 0.0, %v1601
    %1603 = vdwg.mxu0
    %s1604 = sld [smem:[#allocation3 + $0x1]]
    %1605 = vmatprep.subr.mxu0 0.0
    %1606 = vmatpush1.msra.mxu0 %v65
    %1607 = vmatprep.subr.mxu0 0.0
    %1608 = vmatpush1.msra.mxu0 %v64
    %1609 = vmatprep.subr.mxu0 0.0
    %1610 = vmatpush1.msra.mxu0 %v63
    %1611 = vmatprep.subr.mxu0 0.0
    %1612 = vmatpush1.msra.mxu0 %v62
    %1613 = vmatprep.subr.mxu0 0.0
    %1614 = vmatpush1.msra.mxu0 %v61
    %1615 = vmatprep.subr.mxu0 0.0
    %1616 = vmatpush1.msra.mxu0 %v60
    %1617 = vmatprep.subr.mxu0 0.0
    %1618 = vmatpush1.msra.mxu0 %v59
    %1619 = vmatprep.subr.mxu0 0.0
    %1620 = vmatpush1.msra.mxu0 %v58
    %1621 = vmatprep.subr.mxu0 0.0
    %1622 = vmatpush1.msra.mxu0 %v57
    %1623 = vmatprep.subr.mxu0 0.0
    %1624 = vmatpush1.msra.mxu0 %v56
    %1625 = vmatprep.subr.mxu0 0.0
    %1626 = vmatpush1.msra.mxu0 %v55
    %1627 = vmatprep.subr.mxu0 0.0
    %1628 = vmatpush1.msra.mxu0 %v54
    %1629 = vmatprep.subr.mxu0 0.0
    %1630 = vmatpush1.msra.mxu0 %v53
    %1631 = vmatprep.subr.mxu0 0.0
    %1632 = vmatpush1.msra.mxu0 %v52
    %1633 = vmatprep.subr.mxu0 0.0
    %1634 = vmatpush1.msra.mxu0 %v51
    %1635 = vmatprep.subr.mxu0 0.0
    %1636 = vmatpush1.msra.mxu0 %v50
    %1637 = vmatprep.subr.mxu0 0.0
    %1638 = vmatpush2.msra.mxu0 %v81
    %1639 = vmatprep.subr.mxu0 0.0
    %1640 = vmatpush2.msra.mxu0 %v80
    %1641 = vmatprep.subr.mxu0 0.0
    %1642 = vmatpush2.msra.mxu0 %v79
    %1643 = vmatprep.subr.mxu0 0.0
    %1644 = vmatpush2.msra.mxu0 %v78
    %1645 = vmatprep.subr.mxu0 0.0
    %1646 = vmatpush2.msra.mxu0 %v77
    %1647 = vmatprep.subr.mxu0 0.0
    %1648 = vmatpush2.msra.mxu0 %v76
    %1649 = vmatprep.subr.mxu0 0.0
    %1650 = vmatpush2.msra.mxu0 %v75
    %1651 = vmatprep.subr.mxu0 0.0
    %1652 = vmatpush2.msra.mxu0 %v74
    %1653 = vmatprep.subr.mxu0 0.0
    %1654 = vmatpush2.msra.mxu0 %v73
    %1655 = vmatprep.subr.mxu0 0.0
    %1656 = vmatpush2.msra.mxu0 %v72
    %1657 = vmatprep.subr.mxu0 0.0
    %1658 = vmatpush2.msra.mxu0 %v71
    %1659 = vmatprep.subr.mxu0 0.0
    %1660 = vmatpush2.msra.mxu0 %v70
    %1661 = vmatprep.subr.mxu0 0.0
    %1662 = vmatpush2.msra.mxu0 %v69
    %1663 = vmatprep.subr.mxu0 0.0
    %1664 = vmatpush2.msra.mxu0 %v68
    %1665 = vmatprep.subr.mxu0 0.0
    %1666 = vmatpush2.msra.mxu0 %v67
    %1667 = vmatprep.subr.mxu0 0.0
    %1668 = vmatpush2.msra.mxu0 %v66
    %1669 = vmatprep.mubr.f32.mxu0 %v1531
    %1670 = vmatmul.mubr.f32.gmra.mxu0 %v1529
    %v1671 = vpop.f32.mrf.mxu0
    %v1672 = vadd.f32 0.0, %v1671
    %v1673 = vpop.f32.mrf.mxu0
    %1674 = vdwg.mxu0
    %1675 = vmatprep.subr.mxu0 0.0
    %1676 = vmatpush1.msra.mxu0 %v97
    %1677 = vmatprep.subr.mxu0 0.0
    %1678 = vmatpush1.msra.mxu0 %v96
    %1679 = vmatprep.subr.mxu0 0.0
    %1680 = vmatpush1.msra.mxu0 %v95
    %1681 = vmatprep.subr.mxu0 0.0
    %1682 = vmatpush1.msra.mxu0 %v94
    %1683 = vmatprep.subr.mxu0 0.0
    %1684 = vmatpush1.msra.mxu0 %v93
    %1685 = vmatprep.subr.mxu0 0.0
    %1686 = vmatpush1.msra.mxu0 %v92
    %1687 = vmatprep.subr.mxu0 0.0
    %1688 = vmatpush1.msra.mxu0 %v91
    %1689 = vmatprep.subr.mxu0 0.0
    %1690 = vmatpush1.msra.mxu0 %v90
    %1691 = vmatprep.subr.mxu0 0.0
    %1692 = vmatpush1.msra.mxu0 %v89
    %1693 = vmatprep.subr.mxu0 0.0
    %1694 = vmatpush1.msra.mxu0 %v88
    %1695 = vmatprep.subr.mxu0 0.0
    %1696 = vmatpush1.msra.mxu0 %v87
    %1697 = vmatprep.subr.mxu0 0.0
    %1698 = vmatpush1.msra.mxu0 %v86
    %1699 = vmatprep.subr.mxu0 0.0
    %1700 = vmatpush1.msra.mxu0 %v85
    %1701 = vmatprep.subr.mxu0 0.0
    %1702 = vmatpush1.msra.mxu0 %v84
    %1703 = vmatprep.subr.mxu0 0.0
    %1704 = vmatpush1.msra.mxu0 %v83
    %1705 = vmatprep.subr.mxu0 0.0
    %1706 = vmatpush1.msra.mxu0 %v82
    %1707 = vmatprep.subr.mxu0 0.0
    %1708 = vmatpush2.msra.mxu0 %v113
    %1709 = vmatprep.subr.mxu0 0.0
    %1710 = vmatpush2.msra.mxu0 %v112
    %1711 = vmatprep.subr.mxu0 0.0
    %1712 = vmatpush2.msra.mxu0 %v111
    %1713 = vmatprep.subr.mxu0 0.0
    %1714 = vmatpush2.msra.mxu0 %v110
    %1715 = vmatprep.subr.mxu0 0.0
    %1716 = vmatpush2.msra.mxu0 %v109
    %1717 = vmatprep.subr.mxu0 0.0
    %1718 = vmatpush2.msra.mxu0 %v108
    %1719 = vmatprep.subr.mxu0 0.0
    %1720 = vmatpush2.msra.mxu0 %v107
    %1721 = vmatprep.subr.mxu0 0.0
    %1722 = vmatpush2.msra.mxu0 %v106
    %1723 = vmatprep.subr.mxu0 0.0
    %1724 = vmatpush2.msra.mxu0 %v105
    %1725 = vmatprep.subr.mxu0 0.0
    %1726 = vmatpush2.msra.mxu0 %v104
    %1727 = vmatprep.subr.mxu0 0.0
    %1728 = vmatpush2.msra.mxu0 %v103
    %1729 = vmatprep.subr.mxu0 0.0
    %1730 = vmatpush2.msra.mxu0 %v102
    %1731 = vmatprep.subr.mxu0 0.0
    %1732 = vmatpush2.msra.mxu0 %v101
    %1733 = vmatprep.subr.mxu0 0.0
    %1734 = vmatpush2.msra.mxu0 %v100
    %1735 = vmatprep.subr.mxu0 0.0
    %1736 = vmatpush2.msra.mxu0 %v99
    %1737 = vmatprep.subr.mxu0 0.0
    %1738 = vmatpush2.msra.mxu0 %v98
    %1739 = vmatprep.mubr.f32.mxu0 %v1602
    %1740 = vmatmul.mubr.f32.gmra.mxu0 %v1600
    %v1741 = vpop.f32.mrf.mxu0
    %v1742 = vadd.f32 %v1672, %v1741
    %v1743 = vpop.f32.mrf.mxu0
    %1744 = vdwg.mxu0
    %v1745 = vmul.f32 %v1742, 0.00390625
    %v1747 = vsel %vm785, %v1745, 0
    %1749 = vmatprep.subr.mxu0 0.0
    %1750 = vmatpush1.msra.mxu0 0.0
    %1751 = vmatprep.subr.mxu0 0.0
    %1752 = vmatpush1.msra.mxu0 0.0
    %1753 = vmatprep.subr.mxu0 0.0
    %1754 = vmatpush1.msra.mxu0 0.0
    %1755 = vmatprep.subr.mxu0 0.0
    %1756 = vmatpush1.msra.mxu0 0.0
    %1757 = vmatprep.subr.mxu0 0.0
    %1758 = vmatpush1.msra.mxu0 0.0
    %1759 = vmatprep.subr.mxu0 0.0
    %1760 = vmatpush1.msra.mxu0 0.0
    %1761 = vmatprep.subr.mxu0 0.0
    %1762 = vmatpush1.msra.mxu0 0.0
    %1763 = vmatprep.subr.mxu0 0.0
    %1764 = vmatpush1.msra.mxu0 0.0
    %1765 = vmatprep.subr.mxu0 0.0
    %1766 = vmatpush1.msra.mxu0 0.0
    %1767 = vmatprep.subr.mxu0 0.0
    %1768 = vmatpush1.msra.mxu0 0.0
    %1769 = vmatprep.subr.mxu0 0.0
    %1770 = vmatpush1.msra.mxu0 0.0
    %1771 = vmatprep.subr.mxu0 0.0
    %1772 = vmatpush1.msra.mxu0 0.0
    %1773 = vmatprep.subr.mxu0 0.0
    %1774 = vmatpush1.msra.mxu0 0.0
    %1775 = vmatprep.subr.mxu0 0.0
    %1776 = vmatpush1.msra.mxu0 0.0
    %1777 = vmatprep.subr.mxu0 0.0
    %1778 = vmatpush1.msra.mxu0 0.0
    %1779 = vmatprep.subr.mxu0 %v115
    %1780 = vmatpush1.msra.mxu0 %v114
    %1781 = vmatprep.subr.mxu0 0.0
    %1782 = vmatpush2.msra.mxu0 0.0
    %1783 = vmatprep.subr.mxu0 0.0
    %1784 = vmatpush2.msra.mxu0 0.0
    %1785 = vmatprep.subr.mxu0 0.0
    %1786 = vmatpush2.msra.mxu0 0.0
    %1787 = vmatprep.subr.mxu0 0.0
    %1788 = vmatpush2.msra.mxu0 0.0
    %1789 = vmatprep.subr.mxu0 0.0
    %1790 = vmatpush2.msra.mxu0 0.0
    %1791 = vmatprep.subr.mxu0 0.0
    %1792 = vmatpush2.msra.mxu0 0.0
    %1793 = vmatprep.subr.mxu0 0.0
    %1794 = vmatpush2.msra.mxu0 0.0
    %1795 = vmatprep.subr.mxu0 0.0
    %1796 = vmatpush2.msra.mxu0 0.0
    %1797 = vmatprep.subr.mxu0 0.0
    %1798 = vmatpush2.msra.mxu0 0.0
    %1799 = vmatprep.subr.mxu0 0.0
    %1800 = vmatpush2.msra.mxu0 0.0
    %1801 = vmatprep.subr.mxu0 0.0
    %1802 = vmatpush2.msra.mxu0 0.0
    %1803 = vmatprep.subr.mxu0 0.0
    %1804 = vmatpush2.msra.mxu0 0.0
    %1805 = vmatprep.subr.mxu0 0.0
    %1806 = vmatpush2.msra.mxu0 0.0
    %1807 = vmatprep.subr.mxu0 0.0
    %1808 = vmatpush2.msra.mxu0 0.0
    %1809 = vmatprep.subr.mxu0 0.0
    %1810 = vmatpush2.msra.mxu0 0.0
    %1811 = vmatprep.subr.mxu0 0.0
    %1812 = vmatpush2.msra.mxu0 0.0
    %1813 = vmatprep.mubr.f32.mxu0 0.0
    %1814 = vmatmul.mubr.f32.gmra.mxu0 %v1747
    %v1815 = vpop.f32.mrf.mxu0
    %v1816 = vadd.f32 0.0, %v1815
    %v1817 = vpop.f32.mrf.mxu0
    %v1818 = vadd.f32 0.0, %v1817
    %1819 = vdwg.mxu0
    %1820 = vmatprep.subr.mxu0 0.0
    %1821 = vmatpush1.msra.mxu0 0.0
    %1822 = vmatprep.subr.mxu0 0.0
    %1823 = vmatpush1.msra.mxu0 0.0
    %1824 = vmatprep.subr.mxu0 0.0
    %1825 = vmatpush1.msra.mxu0 0.0
    %1826 = vmatprep.subr.mxu0 0.0
    %1827 = vmatpush1.msra.mxu0 0.0
    %1828 = vmatprep.subr.mxu0 0.0
    %1829 = vmatpush1.msra.mxu0 0.0
    %1830 = vmatprep.subr.mxu0 0.0
    %1831 = vmatpush1.msra.mxu0 0.0
    %1832 = vmatprep.subr.mxu0 0.0
    %1833 = vmatpush1.msra.mxu0 0.0
    %1834 = vmatprep.subr.mxu0 0.0
    %1835 = vmatpush1.msra.mxu0 0.0
    %1836 = vmatprep.subr.mxu0 0.0
    %1837 = vmatpush1.msra.mxu0 0.0
    %1838 = vmatprep.subr.mxu0 0.0
    %1839 = vmatpush1.msra.mxu0 0.0
    %1840 = vmatprep.subr.mxu0 0.0
    %1841 = vmatpush1.msra.mxu0 0.0
    %1842 = vmatprep.subr.mxu0 0.0
    %1843 = vmatpush1.msra.mxu0 0.0
    %1844 = vmatprep.subr.mxu0 0.0
    %1845 = vmatpush1.msra.mxu0 0.0
    %1846 = vmatprep.subr.mxu0 0.0
    %1847 = vmatpush1.msra.mxu0 0.0
    %1848 = vmatprep.subr.mxu0 0.0
    %1849 = vmatpush1.msra.mxu0 0.0
    %1850 = vmatprep.subr.mxu0 %v117
    %1851 = vmatpush1.msra.mxu0 %v116
    %1852 = vmatprep.subr.mxu0 0.0
    %1853 = vmatpush2.msra.mxu0 0.0
    %1854 = vmatprep.subr.mxu0 0.0
    %1855 = vmatpush2.msra.mxu0 0.0
    %1856 = vmatprep.subr.mxu0 0.0
    %1857 = vmatpush2.msra.mxu0 0.0
    %1858 = vmatprep.subr.mxu0 0.0
    %1859 = vmatpush2.msra.mxu0 0.0
    %1860 = vmatprep.subr.mxu0 0.0
    %1861 = vmatpush2.msra.mxu0 0.0
    %1862 = vmatprep.subr.mxu0 0.0
    %1863 = vmatpush2.msra.mxu0 0.0
    %1864 = vmatprep.subr.mxu0 0.0
    %1865 = vmatpush2.msra.mxu0 0.0
    %1866 = vmatprep.subr.mxu0 0.0
    %1867 = vmatpush2.msra.mxu0 0.0
    %1868 = vmatprep.subr.mxu0 0.0
    %1869 = vmatpush2.msra.mxu0 0.0
    %1870 = vmatprep.subr.mxu0 0.0
    %1871 = vmatpush2.msra.mxu0 0.0
    %1872 = vmatprep.subr.mxu0 0.0
    %1873 = vmatpush2.msra.mxu0 0.0
    %1874 = vmatprep.subr.mxu0 0.0
    %1875 = vmatpush2.msra.mxu0 0.0
    %1876 = vmatprep.subr.mxu0 0.0
    %1877 = vmatpush2.msra.mxu0 0.0
    %1878 = vmatprep.subr.mxu0 0.0
    %1879 = vmatpush2.msra.mxu0 0.0
    %1880 = vmatprep.subr.mxu0 0.0
    %1881 = vmatpush2.msra.mxu0 0.0
    %1882 = vmatprep.subr.mxu0 0.0
    %1883 = vmatpush2.msra.mxu0 0.0
    %1884 = vmatprep.mubr.f32.mxu0 0.0
    %1885 = vmatmul.mubr.f32.gmra.mxu0 %v1747
    %v1886 = vpop.f32.mrf.mxu0
    %v1887 = vadd.f32 0.0, %v1886
    %v1888 = vpop.f32.mrf.mxu0
    %v1889 = vadd.f32 0.0, %v1888
    %1890 = vdwg.mxu0
    %v1891 = vsub.f32 %v1529, %v1816
    %v1892 = vsub.f32 %v1531, %v1818
    %v1893 = vsub.f32 %v1600, %v1887
    %v1894 = vsub.f32 %v1602, %v1889
    %v1895 = vmul.f32 %v1891, %v1891
    %v1896 = vmul.f32 %v1892, %v1892
    %v1897 = vmul.f32 %v1893, %v1893
    %v1898 = vmul.f32 %v1894, %v1894
    %1899 = vmatprep.subr.mxu0 0.0
    %1900 = vmatpush1.msra.mxu0 %v65
    %1901 = vmatprep.subr.mxu0 0.0
    %1902 = vmatpush1.msra.mxu0 %v64
    %1903 = vmatprep.subr.mxu0 0.0
    %1904 = vmatpush1.msra.mxu0 %v63
    %1905 = vmatprep.subr.mxu0 0.0
    %1906 = vmatpush1.msra.mxu0 %v62
    %1907 = vmatprep.subr.mxu0 0.0
    %1908 = vmatpush1.msra.mxu0 %v61
    %1909 = vmatprep.subr.mxu0 0.0
    %1910 = vmatpush1.msra.mxu0 %v60
    %1911 = vmatprep.subr.mxu0 0.0
    %1912 = vmatpush1.msra.mxu0 %v59
    %1913 = vmatprep.subr.mxu0 0.0
    %1914 = vmatpush1.msra.mxu0 %v58
    %1915 = vmatprep.subr.mxu0 0.0
    %1916 = vmatpush1.msra.mxu0 %v57
    %1917 = vmatprep.subr.mxu0 0.0
    %1918 = vmatpush1.msra.mxu0 %v56
    %1919 = vmatprep.subr.mxu0 0.0
    %1920 = vmatpush1.msra.mxu0 %v55
    %1921 = vmatprep.subr.mxu0 0.0
    %1922 = vmatpush1.msra.mxu0 %v54
    %1923 = vmatprep.subr.mxu0 0.0
    %1924 = vmatpush1.msra.mxu0 %v53
    %1925 = vmatprep.subr.mxu0 0.0
    %1926 = vmatpush1.msra.mxu0 %v52
    %1927 = vmatprep.subr.mxu0 0.0
    %1928 = vmatpush1.msra.mxu0 %v51
    %1929 = vmatprep.subr.mxu0 0.0
    %1930 = vmatpush1.msra.mxu0 %v50
    %1931 = vmatprep.subr.mxu0 0.0
    %1932 = vmatpush2.msra.mxu0 %v81
    %1933 = vmatprep.subr.mxu0 0.0
    %1934 = vmatpush2.msra.mxu0 %v80
    %1935 = vmatprep.subr.mxu0 0.0
    %1936 = vmatpush2.msra.mxu0 %v79
    %1937 = vmatprep.subr.mxu0 0.0
    %1938 = vmatpush2.msra.mxu0 %v78
    %1939 = vmatprep.subr.mxu0 0.0
    %1940 = vmatpush2.msra.mxu0 %v77
    %1941 = vmatprep.subr.mxu0 0.0
    %1942 = vmatpush2.msra.mxu0 %v76
    %1943 = vmatprep.subr.mxu0 0.0
    %1944 = vmatpush2.msra.mxu0 %v75
    %1945 = vmatprep.subr.mxu0 0.0
    %1946 = vmatpush2.msra.mxu0 %v74
    %1947 = vmatprep.subr.mxu0 0.0
    %1948 = vmatpush2.msra.mxu0 %v73
    %1949 = vmatprep.subr.mxu0 0.0
    %1950 = vmatpush2.msra.mxu0 %v72
    %1951 = vmatprep.subr.mxu0 0.0
    %1952 = vmatpush2.msra.mxu0 %v71
    %1953 = vmatprep.subr.mxu0 0.0
    %1954 = vmatpush2.msra.mxu0 %v70
    %1955 = vmatprep.subr.mxu0 0.0
    %1956 = vmatpush2.msra.mxu0 %v69
    %1957 = vmatprep.subr.mxu0 0.0
    %1958 = vmatpush2.msra.mxu0 %v68
    %1959 = vmatprep.subr.mxu0 0.0
    %1960 = vmatpush2.msra.mxu0 %v67
    %1961 = vmatprep.subr.mxu0 0.0
    %1962 = vmatpush2.msra.mxu0 %v66
    %1963 = vmatprep.mubr.f32.mxu0 %v1896
    %1964 = vmatmul.mubr.f32.gmra.mxu0 %v1895
    %v1965 = vpop.f32.mrf.mxu0
    %v1966 = vadd.f32 0.0, %v1965
    %v1967 = vpop.f32.mrf.mxu0
    %1968 = vdwg.mxu0
    %1969 = vmatprep.subr.mxu0 0.0
    %1970 = vmatpush1.msra.mxu0 %v97
    %1971 = vmatprep.subr.mxu0 0.0
    %1972 = vmatpush1.msra.mxu0 %v96
    %1973 = vmatprep.subr.mxu0 0.0
    %1974 = vmatpush1.msra.mxu0 %v95
    %1975 = vmatprep.subr.mxu0 0.0
    %1976 = vmatpush1.msra.mxu0 %v94
    %1977 = vmatprep.subr.mxu0 0.0
    %1978 = vmatpush1.msra.mxu0 %v93
    %1979 = vmatprep.subr.mxu0 0.0
    %1980 = vmatpush1.msra.mxu0 %v92
    %1981 = vmatprep.subr.mxu0 0.0
    %1982 = vmatpush1.msra.mxu0 %v91
    %1983 = vmatprep.subr.mxu0 0.0
    %1984 = vmatpush1.msra.mxu0 %v90
    %1985 = vmatprep.subr.mxu0 0.0
    %1986 = vmatpush1.msra.mxu0 %v89
    %1987 = vmatprep.subr.mxu0 0.0
    %1988 = vmatpush1.msra.mxu0 %v88
    %1989 = vmatprep.subr.mxu0 0.0
    %1990 = vmatpush1.msra.mxu0 %v87
    %1991 = vmatprep.subr.mxu0 0.0
    %1992 = vmatpush1.msra.mxu0 %v86
    %1993 = vmatprep.subr.mxu0 0.0
    %1994 = vmatpush1.msra.mxu0 %v85
    %1995 = vmatprep.subr.mxu0 0.0
    %1996 = vmatpush1.msra.mxu0 %v84
    %1997 = vmatprep.subr.mxu0 0.0
    %1998 = vmatpush1.msra.mxu0 %v83
    %1999 = vmatprep.subr.mxu0 0.0
    %2000 = vmatpush1.msra.mxu0 %v82
    %2001 = vmatprep.subr.mxu0 0.0
    %2002 = vmatpush2.msra.mxu0 %v113
    %2003 = vmatprep.subr.mxu0 0.0
    %2004 = vmatpush2.msra.mxu0 %v112
    %2005 = vmatprep.subr.mxu0 0.0
    %2006 = vmatpush2.msra.mxu0 %v111
    %2007 = vmatprep.subr.mxu0 0.0
    %2008 = vmatpush2.msra.mxu0 %v110
    %2009 = vmatprep.subr.mxu0 0.0
    %2010 = vmatpush2.msra.mxu0 %v109
    %2011 = vmatprep.subr.mxu0 0.0
    %2012 = vmatpush2.msra.mxu0 %v108
    %2013 = vmatprep.subr.mxu0 0.0
    %2014 = vmatpush2.msra.mxu0 %v107
    %2015 = vmatprep.subr.mxu0 0.0
    %2016 = vmatpush2.msra.mxu0 %v106
    %2017 = vmatprep.subr.mxu0 0.0
    %2018 = vmatpush2.msra.mxu0 %v105
    %2019 = vmatprep.subr.mxu0 0.0
    %2020 = vmatpush2.msra.mxu0 %v104
    %2021 = vmatprep.subr.mxu0 0.0
    %2022 = vmatpush2.msra.mxu0 %v103
    %2023 = vmatprep.subr.mxu0 0.0
    %2024 = vmatpush2.msra.mxu0 %v102
    %2025 = vmatprep.subr.mxu0 0.0
    %2026 = vmatpush2.msra.mxu0 %v101
    %2027 = vmatprep.subr.mxu0 0.0
    %2028 = vmatpush2.msra.mxu0 %v100
    %2029 = vmatprep.subr.mxu0 0.0
    %2030 = vmatpush2.msra.mxu0 %v99
    %2031 = vmatprep.subr.mxu0 0.0
    %2032 = vmatpush2.msra.mxu0 %v98
    %2033 = vmatprep.mubr.f32.mxu0 %v1898
    %2034 = vmatmul.mubr.f32.gmra.mxu0 %v1897
    %v2035 = vpop.f32.mrf.mxu0
    %v2036 = vadd.f32 %v1966, %v2035
    %v2037 = vpop.f32.mrf.mxu0
    %2038 = vdwg.mxu0
    %v2039 = vmul.f32 %v2036, 0.00390625
    %v2040 = vadd.f32 %v2039, 1e-05
    %v2041 = vrsqrt.pop %v2040
    %v2043 = vsel %vm785, %v2041, 0
    %2045 = vmatprep.subr.mxu0 0.0
    %2046 = vmatpush1.msra.mxu0 0.0
    %2047 = vmatprep.subr.mxu0 0.0
    %2048 = vmatpush1.msra.mxu0 0.0
    %2049 = vmatprep.subr.mxu0 0.0
    %2050 = vmatpush1.msra.mxu0 0.0
    %2051 = vmatprep.subr.mxu0 0.0
    %2052 = vmatpush1.msra.mxu0 0.0
    %2053 = vmatprep.subr.mxu0 0.0
    %2054 = vmatpush1.msra.mxu0 0.0
    %2055 = vmatprep.subr.mxu0 0.0
    %2056 = vmatpush1.msra.mxu0 0.0
    %2057 = vmatprep.subr.mxu0 0.0
    %2058 = vmatpush1.msra.mxu0 0.0
    %2059 = vmatprep.subr.mxu0 0.0
    %2060 = vmatpush1.msra.mxu0 0.0
    %2061 = vmatprep.subr.mxu0 0.0
    %2062 = vmatpush1.msra.mxu0 0.0
    %2063 = vmatprep.subr.mxu0 0.0
    %2064 = vmatpush1.msra.mxu0 0.0
    %2065 = vmatprep.subr.mxu0 0.0
    %2066 = vmatpush1.msra.mxu0 0.0
    %2067 = vmatprep.subr.mxu0 0.0
    %2068 = vmatpush1.msra.mxu0 0.0
    %2069 = vmatprep.subr.mxu0 0.0
    %2070 = vmatpush1.msra.mxu0 0.0
    %2071 = vmatprep.subr.mxu0 0.0
    %2072 = vmatpush1.msra.mxu0 0.0
    %2073 = vmatprep.subr.mxu0 0.0
    %2074 = vmatpush1.msra.mxu0 0.0
    %2075 = vmatprep.subr.mxu0 %v115
    %2076 = vmatpush1.msra.mxu0 %v114
    %2077 = vmatprep.subr.mxu0 0.0
    %2078 = vmatpush2.msra.mxu0 0.0
    %2079 = vmatprep.subr.mxu0 0.0
    %2080 = vmatpush2.msra.mxu0 0.0
    %2081 = vmatprep.subr.mxu0 0.0
    %2082 = vmatpush2.msra.mxu0 0.0
    %2083 = vmatprep.subr.mxu0 0.0
    %2084 = vmatpush2.msra.mxu0 0.0
    %2085 = vmatprep.subr.mxu0 0.0
    %2086 = vmatpush2.msra.mxu0 0.0
    %2087 = vmatprep.subr.mxu0 0.0
    %2088 = vmatpush2.msra.mxu0 0.0
    %2089 = vmatprep.subr.mxu0 0.0
    %2090 = vmatpush2.msra.mxu0 0.0
    %2091 = vmatprep.subr.mxu0 0.0
    %2092 = vmatpush2.msra.mxu0 0.0
    %2093 = vmatprep.subr.mxu0 0.0
    %2094 = vmatpush2.msra.mxu0 0.0
    %2095 = vmatprep.subr.mxu0 0.0
    %2096 = vmatpush2.msra.mxu0 0.0
    %2097 = vmatprep.subr.mxu0 0.0
    %2098 = vmatpush2.msra.mxu0 0.0
    %2099 = vmatprep.subr.mxu0 0.0
    %2100 = vmatpush2.msra.mxu0 0.0
    %2101 = vmatprep.subr.mxu0 0.0
    %2102 = vmatpush2.msra.mxu0 0.0
    %2103 = vmatprep.subr.mxu0 0.0
    %2104 = vmatpush2.msra.mxu0 0.0
    %2105 = vmatprep.subr.mxu0 0.0
    %2106 = vmatpush2.msra.mxu0 0.0
    %2107 = vmatprep.subr.mxu0 0.0
    %2108 = vmatpush2.msra.mxu0 0.0
    %2109 = vmatprep.mubr.f32.mxu0 0.0
    %2110 = vmatmul.mubr.f32.gmra.mxu0 %v2043
    %v2111 = vpop.f32.mrf.mxu0
    %v2112 = vadd.f32 0.0, %v2111
    %v2113 = vpop.f32.mrf.mxu0
    %v2114 = vadd.f32 0.0, %v2113
    %2115 = vdwg.mxu0
    %2116 = vmatprep.subr.mxu0 0.0
    %2117 = vmatpush1.msra.mxu0 0.0
    %2118 = vmatprep.subr.mxu0 0.0
    %2119 = vmatpush1.msra.mxu0 0.0
    %2120 = vmatprep.subr.mxu0 0.0
    %2121 = vmatpush1.msra.mxu0 0.0
    %2122 = vmatprep.subr.mxu0 0.0
    %2123 = vmatpush1.msra.mxu0 0.0
    %2124 = vmatprep.subr.mxu0 0.0
    %2125 = vmatpush1.msra.mxu0 0.0
    %2126 = vmatprep.subr.mxu0 0.0
    %2127 = vmatpush1.msra.mxu0 0.0
    %2128 = vmatprep.subr.mxu0 0.0
    %2129 = vmatpush1.msra.mxu0 0.0
    %2130 = vmatprep.subr.mxu0 0.0
    %2131 = vmatpush1.msra.mxu0 0.0
    %2132 = vmatprep.subr.mxu0 0.0
    %2133 = vmatpush1.msra.mxu0 0.0
    %2134 = vmatprep.subr.mxu0 0.0
    %2135 = vmatpush1.msra.mxu0 0.0
    %2136 = vmatprep.subr.mxu0 0.0
    %2137 = vmatpush1.msra.mxu0 0.0
    %2138 = vmatprep.subr.mxu0 0.0
    %2139 = vmatpush1.msra.mxu0 0.0
    %2140 = vmatprep.subr.mxu0 0.0
    %2141 = vmatpush1.msra.mxu0 0.0
    %2142 = vmatprep.subr.mxu0 0.0
    %2143 = vmatpush1.msra.mxu0 0.0
    %2144 = vmatprep.subr.mxu0 0.0
    %2145 = vmatpush1.msra.mxu0 0.0
    %2146 = vmatprep.subr.mxu0 %v117
    %2147 = vmatpush1.msra.mxu0 %v116
    %2148 = vmatprep.subr.mxu0 0.0
    %2149 = vmatpush2.msra.mxu0 0.0
    %2150 = vmatprep.subr.mxu0 0.0
    %2151 = vmatpush2.msra.mxu0 0.0
    %2152 = vmatprep.subr.mxu0 0.0
    %2153 = vmatpush2.msra.mxu0 0.0
    %2154 = vmatprep.subr.mxu0 0.0
    %2155 = vmatpush2.msra.mxu0 0.0
    %2156 = vmatprep.subr.mxu0 0.0
    %2157 = vmatpush2.msra.mxu0 0.0
    %2158 = vmatprep.subr.mxu0 0.0
    %2159 = vmatpush2.msra.mxu0 0.0
    %2160 = vmatprep.subr.mxu0 0.0
    %2161 = vmatpush2.msra.mxu0 0.0
    %2162 = vmatprep.subr.mxu0 0.0
    %2163 = vmatpush2.msra.mxu0 0.0
    %2164 = vmatprep.subr.mxu0 0.0
    %2165 = vmatpush2.msra.mxu0 0.0
    %2166 = vmatprep.subr.mxu0 0.0
    %2167 = vmatpush2.msra.mxu0 0.0
    %2168 = vmatprep.subr.mxu0 0.0
    %2169 = vmatpush2.msra.mxu0 0.0
    %2170 = vmatprep.subr.mxu0 0.0
    %2171 = vmatpush2.msra.mxu0 0.0
    %2172 = vmatprep.subr.mxu0 0.0
    %2173 = vmatpush2.msra.mxu0 0.0
    %2174 = vmatprep.subr.mxu0 0.0
    %2175 = vmatpush2.msra.mxu0 0.0
    %2176 = vmatprep.subr.mxu0 0.0
    %2177 = vmatpush2.msra.mxu0 0.0
    %2178 = vmatprep.subr.mxu0 0.0
    %2179 = vmatpush2.msra.mxu0 0.0
    %2180 = vmatprep.mubr.f32.mxu0 0.0
    %2181 = vmatmul.mubr.f32.gmra.mxu0 %v2043
    %v2182 = vpop.f32.mrf.mxu0
    %v2183 = vadd.f32 0.0, %v2182
    %v2184 = vpop.f32.mrf.mxu0
    %v2185 = vadd.f32 0.0, %v2184
    %2186 = vdwg.mxu0
    %v2187 = vmul.f32 %v1891, %v2112
    %v2188 = vmul.f32 %v1892, %v2114
    %v2189 = vmul.f32 %v1893, %v2183
    %v2190 = vmul.f32 %v1894, %v2185
    %vm2191 = vcmp.ge.f32.partialorder %v2187, 0.0
    %vm2192 = vcmp.ge.f32.partialorder %v2188, 0.0
    %vm2193 = vcmp.ge.f32.partialorder %v2189, 0.0
    %vm2194 = vcmp.ge.f32.partialorder %v2190, 0.0
    %v2195 = vstv %s1604
    %v2196 = vmul.f32 %v2195, %v2187
    %v2197 = vmul.f32 %v2195, %v2188
    %v2198 = vmul.f32 %v2195, %v2189
    %v2199 = vmul.f32 %v2195, %v2190
    %v2200 = vsel %vm2191, %v2187, %v2196
    %v2201 = vsel %vm2192, %v2188, %v2197
    %v2202 = vsel %vm2193, %v2189, %v2198
    %v2203 = vsel %vm2194, %v2190, %v2199
    %v2204 = vadd.f32 %v2200, %v1250
    %v2205 = vadd.f32 %v2201, %v1251
    %v2206 = vadd.f32 %v2202, %v1252
    %v2207 = vadd.f32 %v2203, %v1253
    %2208 = vst [vmem:[%s8] sm:$0xff] %v2204
    %2209 = vst [vmem:[%s8 + $0x8] sm:$0xff] %v2205
    %2210 = vst [vmem:[%s8 + $0x10] sm:$0xff] %v2206
    %2211 = vst [vmem:[%s8 + $0x18] sm:$0xff] %v2207
    // Predicated region
    $region38: #{_lambda_.1} parent=1 // pred_check
      _
    $region39: #{_lambda_.1} parent=1 // pred_check_branch
      %2213 = sbr.rel (0) target = $region41
    $region40: #{_lambda_.1} parent=1 // pred_region
      _
    $region41: #{_lambda_.1} parent=1 // pred_fallthru
      _
    // Predicated region
    $region42: #{_lambda_.1} parent=1 // pred_check
      _
    $region43: #{_lambda_.1} parent=1 // pred_check_branch
      %2215 = sbr.rel (0) target = $region45
    $region44: #{_lambda_.1} parent=1 // pred_region
      _
    $region45: #{_lambda_.1} parent=1 // pred_fallthru
      _
    %2216 = vsyncpa [#allocation4], 1

</llo_original>
